<compile_context>
chip_gen: v7x
topology: tpu7x:2x2x1
jax: 0.10.0
libtpu: 0.0.40
codegen_flags: <defaults>
</compile_context>

<pallas_src>
import functools

import jax
import jax.numpy as jnp
from jax.experimental import pallas as pl
from jax.experimental.pallas import tpu as pltpu


def _round_up(x, m):
    return (x + m - 1) // m * m


# ----------------------------- Pallas kernels -----------------------------

def _gcn2_kernel(a_ref, x_ref, w1_ref, b1_ref, w2_ref, b2_ref, z_ref):
    """Whole 2-layer GCN for one view, fully VMEM-resident.

    z = ReLU(A @ (ReLU(A @ (x @ W1) + b1) @ W2) + b2)
    bf16 MXU inputs, f32 accumulation, f32 output.
    """
    a = a_ref[...]                                                   # [Np, Np] bf16
    h = jnp.dot(x_ref[...], w1_ref[...],
                preferred_element_type=jnp.float32)                  # [Np, H] f32
    h = jnp.dot(a, h.astype(a.dtype),
                preferred_element_type=jnp.float32) + b1_ref[...]
    h = jnp.maximum(h, 0.0)
    h = jnp.dot(h.astype(w2_ref.dtype), w2_ref[...],
                preferred_element_type=jnp.float32)
    h = jnp.dot(a, h.astype(a.dtype),
                preferred_element_type=jnp.float32) + b2_ref[...]
    z_ref[...] = jnp.maximum(h, 0.0)


def _project_kernel(z_ref, w1_ref, b1_ref, w2_ref, b2_ref, o_ref):
    """Encoder.project: fc2(ELU(fc1(z))); bf16 cast done in-kernel."""
    h = jnp.dot(z_ref[...].astype(w1_ref.dtype), w1_ref[...],
                preferred_element_type=jnp.float32) + b1_ref[...]
    h = jnp.where(h > 0.0, h, jnp.expm1(jnp.minimum(h, 0.0)))        # ELU(alpha=1)
    o_ref[...] = (jnp.dot(h.astype(w2_ref.dtype), w2_ref[...],
                          preferred_element_type=jnp.float32) + b2_ref[...])


# ----------------------------- kernel wrappers -----------------------------

def gcn2_fused(pp, a_b, xs_b):
    """Batched fused 2-layer GCN: a_b [B,Np,Np] bf16, xs_b [B,Np,F] bf16 -> [B,Np,H] f32."""
    batch, n_p, _ = a_b.shape
    f = xs_b.shape[2]
    h = pp["g1_w"].shape[1]
    flops = 2 * batch * (n_p * f * h + 2 * n_p * n_p * h + n_p * h * h)
    bytes_acc = (a_b.size * 2 + xs_b.size * 2 + batch * n_p * h * 4
                 + (pp["g1_w"].size + pp["g2_w"].size) * 2
                 + (pp["g1_b"].size + pp["g2_b"].size) * 4)
    return pl.pallas_call(
        _gcn2_kernel,
        out_shape=jax.ShapeDtypeStruct((batch, n_p, h), jnp.float32),
        grid_spec=pltpu.PrefetchScalarGridSpec(
            num_scalar_prefetch=0,
            grid=(batch,),
            in_specs=[
                pl.BlockSpec((pl.Squeezed(), n_p, n_p), lambda b: (b, 0, 0)),
                pl.BlockSpec((pl.Squeezed(), n_p, f), lambda b: (b, 0, 0)),
                pl.BlockSpec((f, h), lambda b: (0, 0)),
                pl.BlockSpec((1, h), lambda b: (0, 0)),
                pl.BlockSpec((h, h), lambda b: (0, 0)),
                pl.BlockSpec((1, h), lambda b: (0, 0)),
            ],
            out_specs=pl.BlockSpec((pl.Squeezed(), n_p, h), lambda b: (b, 0, 0))),
        compiler_params=pltpu.CompilerParams(
            dimension_semantics=("parallel",)),
        cost_estimate=pl.CostEstimate(
            flops=flops, transcendentals=0, bytes_accessed=bytes_acc),
    )(a_b, xs_b, pp["g1_w"], pp["g1_b"], pp["g2_w"], pp["g2_b"])


def project(pp, z):
    """Encoder.project: fc2(ELU(fc1(z))) — one full-block launch, no host padding."""
    n, h = z.shape
    p = pp["fc1_w"].shape[1]
    return pl.pallas_call(
        _project_kernel,
        out_shape=jax.ShapeDtypeStruct((n, h), jnp.float32),
        grid_spec=pltpu.PrefetchScalarGridSpec(
            num_scalar_prefetch=0,
            grid=(1,),
            in_specs=[
                pl.BlockSpec((n, h), lambda i: (0, 0)),
                pl.BlockSpec((h, p), lambda i: (0, 0)),
                pl.BlockSpec((1, p), lambda i: (0, 0)),
                pl.BlockSpec((p, h), lambda i: (0, 0)),
                pl.BlockSpec((1, h), lambda i: (0, 0)),
            ],
            out_specs=pl.BlockSpec((n, h), lambda i: (0, 0))),
    )(z, pp["fc1_w"], pp["fc1_b"], pp["fc2_w"], pp["fc2_b"])


# ----------------------------- plain-JAX glue -----------------------------
# TODO(synk): the dense A_hat path is O(N^2); for large graphs switch to a
# CSR row-gather SpMM (row offsets/column ids scalar-prefetched into SMEM,
# manual make_async_copy gather of h rows) and budget tiles against v7x's
# 64 MiB VMEM (raise vmem_limit_bytes if needed).

def build_norm_adj(edge_index, edge_weight, num_nodes, n_pad):
    """Dense symmetric-normalized adjacency with self-loops, zero-padded, bf16."""
    src = edge_index[0]
    dst = edge_index[1]
    a = jnp.zeros((num_nodes, num_nodes), jnp.float32)
    a = a.at[dst, src].add(edge_weight)
    a = a + jnp.eye(num_nodes, dtype=jnp.float32)            # self loops
    deg = a.sum(axis=1)
    dinv = jnp.where(deg > 0.0, jax.lax.rsqrt(jnp.maximum(deg, 1e-12)), 0.0)
    a = a * dinv[:, None] * dinv[None, :]
    a_p = jnp.zeros((n_pad, n_pad), jnp.float32).at[:num_nodes, :num_nodes].set(a)
    return a_p.astype(jnp.bfloat16)


def _pad_rows(x, rows):
    return jnp.zeros((rows, x.shape[1]), x.dtype).at[:x.shape[0], :].set(x)


def make_augmentor(key, pf=0.3, pe=0.3):
    """Feature-masking + edge-dropping augmentor (edge drop = zero edge weight)."""
    # TODO(synk): keys are fixed at construction, so masks are deterministic per
    # forward; PyG's augmentors redraw randomness on every call.
    kf, ke = jax.random.split(key)

    def aug(x, edge_index, edge_weight):
        fmask = (jax.random.uniform(kf, (1, x.shape[1])) > pf).astype(x.dtype)
        emask = (jax.random.uniform(ke, edge_weight.shape) > pe).astype(edge_weight.dtype)
        return x * fmask, edge_index, edge_weight * emask

    return aug


def init_params(key, in_dim, hidden_dim, proj_dim):
    ks = jax.random.split(key, 8)
    s = 0.1

    def w(k, shp):
        return jax.random.normal(k, shp, jnp.float32) * s

    return {
        "g1_w": w(ks[0], (in_dim, hidden_dim)),
        "g1_b": jnp.zeros((hidden_dim,), jnp.float32),
        "g2_w": w(ks[1], (hidden_dim, hidden_dim)),
        "g2_b": jnp.zeros((hidden_dim,), jnp.float32),
        "fc1_w": w(ks[2], (hidden_dim, proj_dim)),
        "fc1_b": w(ks[3], (proj_dim,)),
        "fc2_w": w(ks[4], (proj_dim, hidden_dim)),
        "fc2_b": w(ks[5], (hidden_dim,)),
    }


def prepare_params(params):
    """Natural (un-padded) shapes: bf16 MXU weights, f32 [1, D] biases."""
    return {
        "g1_w": params["g1_w"].astype(jnp.bfloat16),
        "g1_b": params["g1_b"][None, :].astype(jnp.float32),
        "g2_w": params["g2_w"].astype(jnp.bfloat16),
        "g2_b": params["g2_b"][None, :].astype(jnp.float32),
        "fc1_w": params["fc1_w"].astype(jnp.bfloat16),
        "fc1_b": params["fc1_b"][None, :].astype(jnp.float32),
        "fc2_w": params["fc2_w"].astype(jnp.bfloat16),
        "fc2_b": params["fc2_b"][None, :].astype(jnp.float32),
    }


def encoder_forward(pp, augmentors, x, edge_index0, edge_index, edge_weight=None):
    """Mirrors Encoder.forward: returns (z, z1, z2, edge_index1, edge_index2)."""
    del edge_index0  # unused in the reference forward as well
    n, _ = x.shape
    if edge_weight is None:
        edge_weight = jnp.ones((edge_index.shape[1],), jnp.float32)
    aug1, aug2 = augmentors
    x1, ei1, ew1 = aug1(x, edge_index, edge_weight)
    x2, ei2, ew2 = aug2(x, edge_index, edge_weight)

    n_pad = _round_up(n, 8)                              # sublane alignment only
    a_b = jnp.stack([
        build_norm_adj(edge_index, edge_weight, n, n_pad),
        build_norm_adj(ei1, ew1, n, n_pad),
        build_norm_adj(ei2, ew2, n, n_pad),
    ])                                                   # [3, Np, Np] bf16
    xs_b = jnp.stack([
        _pad_rows(x, n_pad),
        _pad_rows(x1, n_pad),
        _pad_rows(x2, n_pad),
    ]).astype(jnp.bfloat16)                              # [3, Np, F] bf16

    z_b = gcn2_fused(pp, a_b, xs_b)                      # [3, Np, H] f32
    z, z1, z2 = z_b[0, :n], z_b[1, :n], z_b[2, :n]
    return z, z1, z2, ei1, ei2


# ----------------------------- main -----------------------------

if __name__ == "__main__":
    N, F_IN, HIDDEN, PROJ = 256, 16, 32, 16

    root = jax.random.PRNGKey(0)
    k_x, k_p, k_a1, k_a2 = jax.random.split(root, 4)

    # deterministic inputs
    x = jax.random.normal(k_x, (N, F_IN), jnp.float32)

    # ring graph, both directions -> E = 2N edges
    idx = jnp.arange(N, dtype=jnp.int32)
    src = jnp.concatenate([idx, (idx + 1) % N])
    dst = jnp.concatenate([(idx + 1) % N, idx])
    edge_index = jnp.stack([src, dst], axis=0)            # [2, 512]
    edge_weight = jnp.ones((edge_index.shape[1],), jnp.float32)
    edge_index0 = edge_index                              # unused, mirrors signature

    params = init_params(k_p, F_IN, HIDDEN, PROJ)
    pp = prepare_params(params)
    augmentors = (make_augmentor(k_a1, pf=0.3, pe=0.3),
                  make_augmentor(k_a2, pf=0.4, pe=0.4))

    fwd = jax.jit(functools.partial(encoder_forward, pp, augmentors))
    z, z1, z2, ei1, ei2 = fwd(x, edge_index0, edge_index, edge_weight)
    jax.block_until_ready((z, z1, z2, ei1, ei2))

    # also exercise the projection head (Encoder.project)
    p = jax.jit(functools.partial(project, pp))(z)
    jax.block_until_ready(p)

    assert z.shape == (N, HIDDEN) and z1.shape == (N, HIDDEN) and z2.shape == (N, HIDDEN)
    assert p.shape == (N, HIDDEN)
    assert bool(jnp.all(jnp.isfinite(z))) and bool(jnp.all(jnp.isfinite(p)))
    print("KERNEL_OK")
</pallas_src>

<mosaic_0001>
module attributes {stable_mosaic.version = 11 : i64} {
  func.func private @main(%arg0: i32) attributes {dimension_semantics = [#tpu.dimension_semantics<core_parallel>], iteration_bounds = array<i64: 2>, tpu.core_type = #tpu.core_type<sc_scalar_subcore>, window_params = []} {
    return
  }
}

module attributes {stable_mosaic.version = 11 : i64} {
  func.func private @main(%arg0: i32) attributes {dimension_semantics = [#tpu.dimension_semantics<core_parallel>], iteration_bounds = array<i64: 2>, tpu.core_type = #tpu.core_type<sc_scalar_subcore>, window_params = []} {
    return
  }
}

module attributes {stable_mosaic.version = 11 : i64} {
  func.func @_gcn2_kernel(%arg0: i32, %arg1: memref<1x256x256xbf16, #tpu.memory_space<vmem>>, %arg2: memref<1x256x16xbf16, #tpu.memory_space<vmem>>, %arg3: memref<16x32xbf16, #tpu.memory_space<vmem>>, %arg4: memref<1x32xf32, #tpu.memory_space<vmem>>, %arg5: memref<32x32xbf16, #tpu.memory_space<vmem>>, %arg6: memref<1x32xf32, #tpu.memory_space<vmem>>, %arg7: memref<1x256x32xf32, #tpu.memory_space<vmem>>) attributes {dimension_semantics = [#tpu.dimension_semantics<parallel>], iteration_bounds = array<i64: 3>, scalar_prefetch = 0 : i64, scratch_operands = 0 : i64, tpu.core_type = #tpu.core_type<tc>, window_params = [{transform_indices = @transform_0, window_bounds = array<i64: 1, 256, 256>}, {transform_indices = @transform_1, window_bounds = array<i64: 1, 256, 16>}, {pipeline_mode = #tpu.pipeline_mode<synchronous>, transform_indices = @transform_2, window_bounds = array<i64: 16, 32>}, {pipeline_mode = #tpu.pipeline_mode<synchronous>, transform_indices = @transform_3, window_bounds = array<i64: 1, 32>}, {pipeline_mode = #tpu.pipeline_mode<synchronous>, transform_indices = @transform_4, window_bounds = array<i64: 32, 32>}, {pipeline_mode = #tpu.pipeline_mode<synchronous>, transform_indices = @transform_5, window_bounds = array<i64: 1, 32>}, {transform_indices = @transform_6, window_bounds = array<i64: 1, 256, 32>}]} {
    %c0 = arith.constant 0 : index
    %c0_0 = arith.constant 0 : index
    %c0_1 = arith.constant 0 : index
    %0 = vector.load %arg1[%c0, %c0_0, %c0_1] : memref<1x256x256xbf16, #tpu.memory_space<vmem>>, vector<1x256x256xbf16>
    %1 = vector.shape_cast %0 : vector<1x256x256xbf16> to vector<256x256xbf16>
    %c0_2 = arith.constant 0 : index
    %c0_3 = arith.constant 0 : index
    %c0_4 = arith.constant 0 : index
    %2 = vector.load %arg2[%c0_2, %c0_3, %c0_4] : memref<1x256x16xbf16, #tpu.memory_space<vmem>>, vector<1x256x16xbf16>
    %3 = vector.shape_cast %2 : vector<1x256x16xbf16> to vector<256x16xbf16>
    %c0_5 = arith.constant 0 : index
    %c0_6 = arith.constant 0 : index
    %4 = vector.load %arg3[%c0_5, %c0_6] : memref<16x32xbf16, #tpu.memory_space<vmem>>, vector<16x32xbf16>
    %cst = arith.constant dense<0.000000e+00> : vector<256x32xf32>
    %5 = tpu.matmul %3, %4, %cst {dimension_numbers = #tpu.dot_dimension_numbers<[1], [0], [0], [1], [0, 0, 1, 1], [], []>} : vector<256x16xbf16>, vector<16x32xbf16>, vector<256x32xf32> -> vector<256x32xf32>
    %6 = arith.truncf %5 : vector<256x32xf32> to vector<256x32xbf16>
    %cst_7 = arith.constant dense<0.000000e+00> : vector<256x32xf32>
    %7 = tpu.matmul %1, %6, %cst_7 {dimension_numbers = #tpu.dot_dimension_numbers<[1], [0], [0], [1], [0, 0, 1, 1], [], []>} : vector<256x256xbf16>, vector<256x32xbf16>, vector<256x32xf32> -> vector<256x32xf32>
    %c0_8 = arith.constant 0 : index
    %c0_9 = arith.constant 0 : index
    %8 = vector.load %arg4[%c0_8, %c0_9] : memref<1x32xf32, #tpu.memory_space<vmem>>, vector<1x32xf32>
    %9 = vector.broadcast %8 : vector<1x32xf32> to vector<256x32xf32>
    %10 = arith.addf %7, %9 : vector<256x32xf32>
    %cst_10 = arith.constant 0.000000e+00 : f32
    %11 = vector.broadcast %cst_10 : f32 to vector<256x32xf32>
    %12 = arith.maximumf %10, %11 : vector<256x32xf32>
    %13 = arith.truncf %12 : vector<256x32xf32> to vector<256x32xbf16>
    %c0_11 = arith.constant 0 : index
    %c0_12 = arith.constant 0 : index
    %14 = vector.load %arg5[%c0_11, %c0_12] : memref<32x32xbf16, #tpu.memory_space<vmem>>, vector<32x32xbf16>
    %cst_13 = arith.constant dense<0.000000e+00> : vector<256x32xf32>
    %15 = tpu.matmul %13, %14, %cst_13 {dimension_numbers = #tpu.dot_dimension_numbers<[1], [0], [0], [1], [0, 0, 1, 1], [], []>} : vector<256x32xbf16>, vector<32x32xbf16>, vector<256x32xf32> -> vector<256x32xf32>
    %16 = arith.truncf %15 : vector<256x32xf32> to vector<256x32xbf16>
    %cst_14 = arith.constant dense<0.000000e+00> : vector<256x32xf32>
    %17 = tpu.matmul %1, %16, %cst_14 {dimension_numbers = #tpu.dot_dimension_numbers<[1], [0], [0], [1], [0, 0, 1, 1], [], []>} : vector<256x256xbf16>, vector<256x32xbf16>, vector<256x32xf32> -> vector<256x32xf32>
    %c0_15 = arith.constant 0 : index
    %c0_16 = arith.constant 0 : index
    %18 = vector.load %arg6[%c0_15, %c0_16] : memref<1x32xf32, #tpu.memory_space<vmem>>, vector<1x32xf32>
    %19 = vector.broadcast %18 : vector<1x32xf32> to vector<256x32xf32>
    %20 = arith.addf %17, %19 : vector<256x32xf32>
    %cst_17 = arith.constant 0.000000e+00 : f32
    %21 = vector.broadcast %cst_17 : f32 to vector<256x32xf32>
    %22 = arith.maximumf %20, %21 : vector<256x32xf32>
    %c0_18 = arith.constant 0 : index
    %c0_19 = arith.constant 0 : index
    %c0_20 = arith.constant 0 : index
    %23 = vector.load %arg7[%c0_18, %c0_19, %c0_20] : memref<1x256x32xf32, #tpu.memory_space<vmem>>, vector<1x256x32xf32>
    %24 = vector.shape_cast %23 : vector<1x256x32xf32> to vector<256x32xf32>
    %25 = vector.shape_cast %22 : vector<256x32xf32> to vector<1x256x32xf32>
    tpu.vector_store %arg7[%c0_18, %c0_19, %c0_20], %25 {strides = array<i32>} : memref<1x256x32xf32, #tpu.memory_space<vmem>>, vector<1x256x32xf32>,
    return
  }
  func.func @transform_0(%arg0: i32) -> (i32, i32, i32) {
    %c0_i32 = arith.constant 0 : i32
    %c0_i32_0 = arith.constant 0 : i32
    %c0_i32_1 = arith.constant 0 : i32
    return %arg0, %c0_i32, %c0_i32_0 : i32, i32, i32
  }
  func.func @transform_1(%arg0: i32) -> (i32, i32, i32) {
    %c0_i32 = arith.constant 0 : i32
    %c0_i32_0 = arith.constant 0 : i32
    %c0_i32_1 = arith.constant 0 : i32
    return %arg0, %c0_i32, %c0_i32_0 : i32, i32, i32
  }
  func.func @transform_2(%arg0: i32) -> (i32, i32) {
    %c0_i32 = arith.constant 0 : i32
    %c0_i32_0 = arith.constant 0 : i32
    %c0_i32_1 = arith.constant 0 : i32
    return %c0_i32, %c0_i32_0 : i32, i32
  }
  func.func @transform_3(%arg0: i32) -> (i32, i32) {
    %c0_i32 = arith.constant 0 : i32
    %c0_i32_0 = arith.constant 0 : i32
    %c0_i32_1 = arith.constant 0 : i32
    return %c0_i32, %c0_i32_0 : i32, i32
  }
  func.func @transform_4(%arg0: i32) -> (i32, i32) {
    %c0_i32 = arith.constant 0 : i32
    %c0_i32_0 = arith.constant 0 : i32
    %c0_i32_1 = arith.constant 0 : i32
    return %c0_i32, %c0_i32_0 : i32, i32
  }
  func.func @transform_5(%arg0: i32) -> (i32, i32) {
    %c0_i32 = arith.constant 0 : i32
    %c0_i32_0 = arith.constant 0 : i32
    %c0_i32_1 = arith.constant 0 : i32
    return %c0_i32, %c0_i32_0 : i32, i32
  }
  func.func @transform_6(%arg0: i32) -> (i32, i32, i32) {
    %c0_i32 = arith.constant 0 : i32
    %c0_i32_0 = arith.constant 0 : i32
    %c0_i32_1 = arith.constant 0 : i32
    return %arg0, %c0_i32, %c0_i32_0 : i32, i32, i32
  }
}

</mosaic_0001>

<llo_original>
// kernel: encoder_forward.1
$region0: #{encoder_forward.1}
  #allocation0 [shape = 'u32[]', space=smem, size = 0x4, offset = 0x4, fixed_abs, tag = 'smem constant byte address 0x4 - core index']
  #allocation1 [shape = 'u32[144,128]{1,0:T(1,128)}', space=vmem, size = 0x12000, scoped, tag = 'internal scratch']
  %s0 = inlined_call_operand.vmem [shape: bf16[3,256,256], index: 0, kind: input, shape index: {}]
  %s1 = inlined_call_operand.vmem [shape: bf16[3,256,16], index: 1, kind: input, shape index: {}]
  %s2 = inlined_call_operand.vmem [shape: bf16[16,32], index: 2, kind: input, shape index: {}]
  %s3 = inlined_call_operand.vmem [shape: f32[1,32], index: 3, kind: input, shape index: {}, may-alias: {3,5}]
  %s4 = inlined_call_operand.vmem [shape: bf16[32,32], index: 4, kind: input, shape index: {}]
  %s5 = inlined_call_operand.vmem [shape: f32[1,32], index: 5, kind: input, shape index: {}, may-alias: {3,5}]
  %s6 = inlined_call_operand.vmem [shape: f32[3,256,32], index: 6, kind: output, shape index: {}]
  %s7 = sld [smem:[#allocation0]]
  $region57: #{encoder_forward.1} parent=0
    _
  %s9 = ssub.s32 1, %s7
  %s10 = scalar_select 0, %s9, %s7
  loop: start=0, step=1, limit=5
  $region2: #{encoder_forward.1} parent=0 // loop_pre_header
    _
  $region3: #{encoder_forward.1} parent=0 // loop_header
    %s12 = sphi 0, %s16
    %p13 = scmp.ge.s32.totalorder %s12, 5
    %s22 = sphi 0, %s24
    %s25 = sphi 0, %s22
    %s26 = sphi 0, %s25
    %s42 = sphi 0, %s26
    %s48 = sphi 0, %s50
    %s51 = sphi 0, %s48
    %s52 = sphi 0, %s51
    %s68 = sphi 0, %s52
    %s72 = sphi 0, %s72
    %s74 = sphi 0, %s72
    %s75 = sphi 0, %s74
    %s89 = sphi 0, %s75
    %s93 = sphi 0, %s93
    %s95 = sphi 0, %s93
    %s96 = sphi 0, %s95
    %s110 = sphi 0, %s96
    %s114 = sphi 0, %s114
    %s116 = sphi 0, %s114
    %s117 = sphi 0, %s116
    %s131 = sphi 0, %s117
    %s135 = sphi 0, %s135
    %s137 = sphi 0, %s135
    %s138 = sphi 0, %s137
    %s152 = sphi 0, %s138
    %s158 = sphi 0, %s160
    %s161 = sphi 0, %s158
    %s162 = sphi 0, %s161
    %s178 = sphi 0, %s162
  $region4: #{encoder_forward.1} parent=0 // loop_header_branch
    %15 = sbr.rel (%p13) target = $region8
  $region5: #{encoder_forward.1} parent=0 // loop_body
    %s17 = ssub.s32 %s12, 1
    %s18 = ssub.s32 %s12, 2
    %s19 = sadd.s32 %s12, 1
    %s20 = ssub.s32 %s12, %s19
    %p21 = scmp.eq.s32.totalorder %s20, 0
    %s23 = sadd.s32 %s22, 1
    %s24 = scalar_select %p21, %s22, %s23
    %p27 = pneg %p21
    %p28 = scmp.eq.s32.totalorder %s12, 2
    %p29 = por %p27, %p28
    %p30 = scmp.ne.s32.totalorder %s22, %s25
    %p31 = scmp.eq.s32.totalorder %s12, 0
    %p32 = por %p30, %p31
    %p33 = scmp.ne.s32.totalorder %s22, %s25
    %p34 = scmp.eq.s32.totalorder %s17, 2
    %p35 = por %p33, %p34
    %p36 = scmp.ne.s32.totalorder %s25, %s26
    %p37 = scmp.eq.s32.totalorder %s17, 0
    %p38 = por %p36, %p37
    %p39 = scmp.ne.s32.totalorder %s25, %s26
    %p40 = scmp.eq.s32.totalorder %s18, 2
    %p41 = por %p39, %p40
    %p43 = scmp.ne.s32.totalorder %s26, %s42
    %p44 = scmp.eq.s32.totalorder %s18, 0
    %p45 = por %p43, %p44
    %s46 = ssub.s32 %s12, %s19
    %p47 = scmp.eq.s32.totalorder %s46, 0
    %s49 = sadd.s32 %s48, 1
    %s50 = scalar_select %p47, %s48, %s49
    %p53 = pneg %p47
    %p54 = scmp.eq.s32.totalorder %s12, 2
    %p55 = por %p53, %p54
    %p56 = scmp.ne.s32.totalorder %s48, %s51
    %p57 = scmp.eq.s32.totalorder %s12, 0
    %p58 = por %p56, %p57
    %p59 = scmp.ne.s32.totalorder %s48, %s51
    %p60 = scmp.eq.s32.totalorder %s17, 2
    %p61 = por %p59, %p60
    %p62 = scmp.ne.s32.totalorder %s51, %s52
    %p63 = scmp.eq.s32.totalorder %s17, 0
    %p64 = por %p62, %p63
    %p65 = scmp.ne.s32.totalorder %s51, %s52
    %p66 = scmp.eq.s32.totalorder %s18, 2
    %p67 = por %p65, %p66
    %p69 = scmp.ne.s32.totalorder %s52, %s68
    %p70 = scmp.eq.s32.totalorder %s18, 0
    %p71 = por %p69, %p70
    %s73 = sadd.s32 %s72, 1
    %p76 = scmp.eq.s32.totalorder %s12, 2
    %p77 = scmp.ne.s32.totalorder %s72, %s74
    %p78 = scmp.eq.s32.totalorder %s12, 0
    %p79 = por %p77, %p78
    %p80 = scmp.ne.s32.totalorder %s72, %s74
    %p81 = scmp.eq.s32.totalorder %s17, 2
    %p82 = por %p80, %p81
    %p83 = scmp.ne.s32.totalorder %s74, %s75
    %p84 = scmp.eq.s32.totalorder %s17, 0
    %p85 = por %p83, %p84
    %p86 = scmp.ne.s32.totalorder %s74, %s75
    %p87 = scmp.eq.s32.totalorder %s18, 2
    %p88 = por %p86, %p87
    %p90 = scmp.ne.s32.totalorder %s75, %s89
    %p91 = scmp.eq.s32.totalorder %s18, 0
    %p92 = por %p90, %p91
    %s94 = sadd.s32 %s93, 1
    %p97 = scmp.eq.s32.totalorder %s12, 2
    %p98 = scmp.ne.s32.totalorder %s93, %s95
    %p99 = scmp.eq.s32.totalorder %s12, 0
    %p100 = por %p98, %p99
    %p101 = scmp.ne.s32.totalorder %s93, %s95
    %p102 = scmp.eq.s32.totalorder %s17, 2
    %p103 = por %p101, %p102
    %p104 = scmp.ne.s32.totalorder %s95, %s96
    %p105 = scmp.eq.s32.totalorder %s17, 0
    %p106 = por %p104, %p105
    %p107 = scmp.ne.s32.totalorder %s95, %s96
    %p108 = scmp.eq.s32.totalorder %s18, 2
    %p109 = por %p107, %p108
    %p111 = scmp.ne.s32.totalorder %s96, %s110
    %p112 = scmp.eq.s32.totalorder %s18, 0
    %p113 = por %p111, %p112
    %s115 = sadd.s32 %s114, 1
    %p118 = scmp.eq.s32.totalorder %s12, 2
    %p119 = scmp.ne.s32.totalorder %s114, %s116
    %p120 = scmp.eq.s32.totalorder %s12, 0
    %p121 = por %p119, %p120
    %p122 = scmp.ne.s32.totalorder %s114, %s116
    %p123 = scmp.eq.s32.totalorder %s17, 2
    %p124 = por %p122, %p123
    %p125 = scmp.ne.s32.totalorder %s116, %s117
    %p126 = scmp.eq.s32.totalorder %s17, 0
    %p127 = por %p125, %p126
    %p128 = scmp.ne.s32.totalorder %s116, %s117
    %p129 = scmp.eq.s32.totalorder %s18, 2
    %p130 = por %p128, %p129
    %p132 = scmp.ne.s32.totalorder %s117, %s131
    %p133 = scmp.eq.s32.totalorder %s18, 0
    %p134 = por %p132, %p133
    %s136 = sadd.s32 %s135, 1
    %p139 = scmp.eq.s32.totalorder %s12, 2
    %p140 = scmp.ne.s32.totalorder %s135, %s137
    %p141 = scmp.eq.s32.totalorder %s12, 0
    %p142 = por %p140, %p141
    %p143 = scmp.ne.s32.totalorder %s135, %s137
    %p144 = scmp.eq.s32.totalorder %s17, 2
    %p145 = por %p143, %p144
    %p146 = scmp.ne.s32.totalorder %s137, %s138
    %p147 = scmp.eq.s32.totalorder %s17, 0
    %p148 = por %p146, %p147
    %p149 = scmp.ne.s32.totalorder %s137, %s138
    %p150 = scmp.eq.s32.totalorder %s18, 2
    %p151 = por %p149, %p150
    %p153 = scmp.ne.s32.totalorder %s138, %s152
    %p154 = scmp.eq.s32.totalorder %s18, 0
    %p155 = por %p153, %p154
    %s156 = ssub.s32 %s12, %s19
    %p157 = scmp.eq.s32.totalorder %s156, 0
    %s159 = sadd.s32 %s158, 1
    %s160 = scalar_select %p157, %s158, %s159
    %p163 = pneg %p157
    %p164 = scmp.eq.s32.totalorder %s12, 2
    %p165 = por %p163, %p164
    %p166 = scmp.ne.s32.totalorder %s158, %s161
    %p167 = scmp.eq.s32.totalorder %s12, 0
    %p168 = por %p166, %p167
    %p169 = scmp.ne.s32.totalorder %s158, %s161
    %p170 = scmp.eq.s32.totalorder %s17, 2
    %p171 = por %p169, %p170
    %p172 = scmp.ne.s32.totalorder %s161, %s162
    %p173 = scmp.eq.s32.totalorder %s17, 0
    %p174 = por %p172, %p173
    %p175 = scmp.ne.s32.totalorder %s161, %s162
    %p176 = scmp.eq.s32.totalorder %s18, 2
    %p177 = por %p175, %p176
    %p179 = scmp.ne.s32.totalorder %s162, %s178
    %p180 = scmp.eq.s32.totalorder %s18, 0
    %p181 = por %p179, %p180
    %p182 = scmp.le.s32.totalorder 1, %s12
    %p183 = scmp.lt.s32.totalorder %s12, 4
    %p184 = pnand %p182, %p183
    %p185 = pneg %p184
    // Predicated region
    $region9: #{encoder_forward.1} parent=5 // pred_check
      _
    $region10: #{encoder_forward.1} parent=5 // pred_check_branch
      %187 = sbr.rel (%p184) target = $region12
    $region11: #{encoder_forward.1} parent=5 // pred_region
      %s188 = ssub.s32 %s12, 1
      // Predicated region
      $region13: #{encoder_forward.1} parent=11 // pred_check
        %p189 = pneg %p85
      $region14: #{encoder_forward.1} parent=11 // pred_check_branch
        %191 = sbr.rel (%p189) target = $region16
      $region15: #{encoder_forward.1} parent=11 // pred_region
        _
      $region16: #{encoder_forward.1} parent=11 // pred_fallthru
        _
      // Predicated region
      $region17: #{encoder_forward.1} parent=11 // pred_check
        %p192 = pneg %p106
      $region18: #{encoder_forward.1} parent=11 // pred_check_branch
        %194 = sbr.rel (%p192) target = $region20
      $region19: #{encoder_forward.1} parent=11 // pred_region
        _
      $region20: #{encoder_forward.1} parent=11 // pred_fallthru
        _
      // Predicated region
      $region21: #{encoder_forward.1} parent=11 // pred_check
        %p195 = pneg %p127
      $region22: #{encoder_forward.1} parent=11 // pred_check_branch
        %197 = sbr.rel (%p195) target = $region24
      $region23: #{encoder_forward.1} parent=11 // pred_region
        _
      $region24: #{encoder_forward.1} parent=11 // pred_fallthru
        _
      // Predicated region
      $region25: #{encoder_forward.1} parent=11 // pred_check
        %p198 = pneg %p148
      $region26: #{encoder_forward.1} parent=11 // pred_check_branch
        %200 = sbr.rel (%p198) target = $region28
      $region27: #{encoder_forward.1} parent=11 // pred_region
        _
      $region28: #{encoder_forward.1} parent=11 // pred_fallthru
        _
    $region12: #{encoder_forward.1} parent=5 // pred_fallthru
      _
    %p201 = scmp.lt.s32.totalorder %s12, 3
    // Predicated region
    $region29: #{encoder_forward.1} parent=5 // pred_check
      %p202 = pneg %p201
    $region30: #{encoder_forward.1} parent=5 // pred_check_branch
      %204 = sbr.rel (%p202) target = $region32
    $region31: #{encoder_forward.1} parent=5 // pred_region
      // Predicated region
      $region33: #{encoder_forward.1} parent=31 // pred_check
        %p205 = pneg %p32
      $region34: #{encoder_forward.1} parent=31 // pred_check_branch
        %207 = sbr.rel (%p205) target = $region36
      $region35: #{encoder_forward.1} parent=31 // pred_region
        %p208 = scmp.lt.s32.totalorder %s12, 2
        %s209 = scalar_select %p208, %s12, 2
        %s210 = smul.addr %s209, 64
        %s211 = smul.addr %s210, 4
        %s212 = scalar_lea.vmem %s0, %s211
      $region36: #{encoder_forward.1} parent=31 // pred_fallthru
        _
      // Predicated region
      $region37: #{encoder_forward.1} parent=31 // pred_check
        %p213 = pneg %p58
      $region38: #{encoder_forward.1} parent=31 // pred_check_branch
        %215 = sbr.rel (%p213) target = $region40
      $region39: #{encoder_forward.1} parent=31 // pred_region
        %p216 = scmp.lt.s32.totalorder %s12, 2
        %s217 = scalar_select %p216, %s12, 2
        %s218 = smul.addr %s217, 32
        %s219 = smul.addr %s218, 4
        %s220 = scalar_lea.vmem %s1, %s219
      $region40: #{encoder_forward.1} parent=31 // pred_fallthru
        _
    $region32: #{encoder_forward.1} parent=5 // pred_fallthru
      _
    %p221 = scmp.le.s32.totalorder 1, %s12
    %p222 = scmp.lt.s32.totalorder %s12, 4
    %p223 = pnand %p221, %p222
    %p224 = pneg %p223
    // Predicated region
    $region41: #{encoder_forward.1} parent=5 // pred_check
      _
    $region42: #{encoder_forward.1} parent=5 // pred_check_branch
      %226 = sbr.rel (%p223) target = $region44
    $region43: #{encoder_forward.1} parent=5 // pred_region
      %s227 = ssub.s32 %s12, 1
      %p228 = scmp.lt.s32.totalorder %s17, 2
      %s229 = scalar_select %p228, %s17, 2
      %s230 = smul.addr %s229, 64
      %s231 = smul.addr %s230, 4
      %s232 = scalar_lea.vmem %s0, %s231
      %p233 = pneg %p38
      %p234 = pneg %p35
      %p235 = scmp.lt.s32.totalorder %s17, 2
      %s236 = scalar_select %p235, %s17, 2
      %s237 = smul.addr %s236, 32
      %s238 = smul.addr %s237, 4
      %s239 = scalar_lea.vmem %s1, %s238
      %p240 = pneg %p64
      %p241 = pneg %p61
      %p242 = pneg %p85
      %p243 = pneg %p82
      %p244 = pneg %p106
      %p245 = pneg %p103
      %p246 = pneg %p127
      %p247 = pneg %p124
      %p248 = pneg %p148
      %p249 = pneg %p145
      %p250 = pneg %p174
      %p251 = pneg %p171
      %p252 = scmp.lt.s32.totalorder %s17, 2
      %s253 = scalar_select %p252, %s17, 2
      %s254 = smul.addr %s253, 32
      %s255 = smul.addr %s254, 8
      %s256 = scalar_lea.vmem %s6, %s255
      %p257 = scmp.lt.s32.totalorder %s17, 2
      %s258 = scalar_select %p257, %s17, 2
      %s259 = smul.addr %s258, 64
      %s260 = smul.addr %s259, 4
      %s261 = scalar_lea.vmem %s0, %s260
      %p262 = scmp.lt.s32.totalorder %s17, 2
      %s263 = scalar_select %p262, %s17, 2
      %s264 = smul.addr %s263, 32
      %s265 = smul.addr %s264, 4
      %s266 = scalar_lea.vmem %s1, %s265
      %p267 = scmp.lt.s32.totalorder %s17, 2
      %s268 = scalar_select %p267, %s17, 2
      %s269 = smul.addr %s268, 32
      %s270 = smul.addr %s269, 8
      %s271 = scalar_lea.vmem %s6, %s270
      %v273 = vld [vmem:[%s261] sm:$0xff]
      %v274 = vld [vmem:[%s261 + $0x8] sm:$0xff]
      %v275 = vld [vmem:[%s261 + $0x10] sm:$0xff]
      %v276 = vld [vmem:[%s261 + $0x18] sm:$0xff]
      %v277 = vld [vmem:[%s261 + $0x20] sm:$0xff]
      %v278 = vld [vmem:[%s261 + $0x28] sm:$0xff]
      %v279 = vld [vmem:[%s261 + $0x30] sm:$0xff]
      %v280 = vld [vmem:[%s261 + $0x38] sm:$0xff]
      %v281 = vld [vmem:[%s261 + $0x40] sm:$0xff]
      %v282 = vld [vmem:[%s261 + $0x48] sm:$0xff]
      %v283 = vld [vmem:[%s261 + $0x50] sm:$0xff]
      %v284 = vld [vmem:[%s261 + $0x58] sm:$0xff]
      %v285 = vld [vmem:[%s261 + $0x60] sm:$0xff]
      %v286 = vld [vmem:[%s261 + $0x68] sm:$0xff]
      %v287 = vld [vmem:[%s261 + $0x70] sm:$0xff]
      %v288 = vld [vmem:[%s261 + $0x78] sm:$0xff]
      %v289 = vld [vmem:[%s261 + $0x80] sm:$0xff]
      %v290 = vld [vmem:[%s261 + $0x88] sm:$0xff]
      %v291 = vld [vmem:[%s261 + $0x90] sm:$0xff]
      %v292 = vld [vmem:[%s261 + $0x98] sm:$0xff]
      %v293 = vld [vmem:[%s261 + $0xa0] sm:$0xff]
      %v294 = vld [vmem:[%s261 + $0xa8] sm:$0xff]
      %v295 = vld [vmem:[%s261 + $0xb0] sm:$0xff]
      %v296 = vld [vmem:[%s261 + $0xb8] sm:$0xff]
      %v297 = vld [vmem:[%s261 + $0xc0] sm:$0xff]
      %v298 = vld [vmem:[%s261 + $0xc8] sm:$0xff]
      %v299 = vld [vmem:[%s261 + $0xd0] sm:$0xff]
      %v300 = vld [vmem:[%s261 + $0xd8] sm:$0xff]
      %v301 = vld [vmem:[%s261 + $0xe0] sm:$0xff]
      %v302 = vld [vmem:[%s261 + $0xe8] sm:$0xff]
      %v303 = vld [vmem:[%s261 + $0xf0] sm:$0xff]
      %v304 = vld [vmem:[%s261 + $0xf8] sm:$0xff]
      %v305 = vld [vmem:[%s266] sm:$0xf]
      %v306 = vld [vmem:[%s266 + $0x4] sm:$0xf]
      %v307 = vld [vmem:[%s266 + $0x8] sm:$0xf]
      %v308 = vld [vmem:[%s266 + $0xc] sm:$0xf]
      %v309 = vld [vmem:[%s266 + $0x10] sm:$0xf]
      %v310 = vld [vmem:[%s266 + $0x14] sm:$0xf]
      %v311 = vld [vmem:[%s266 + $0x18] sm:$0xf]
      %v312 = vld [vmem:[%s266 + $0x1c] sm:$0xf]
      %v313 = vld [vmem:[%s266 + $0x20] sm:$0xf]
      %v314 = vld [vmem:[%s266 + $0x24] sm:$0xf]
      %v315 = vld [vmem:[%s266 + $0x28] sm:$0xf]
      %v316 = vld [vmem:[%s266 + $0x2c] sm:$0xf]
      %v317 = vld [vmem:[%s266 + $0x30] sm:$0xf]
      %v318 = vld [vmem:[%s266 + $0x34] sm:$0xf]
      %v319 = vld [vmem:[%s266 + $0x38] sm:$0xf]
      %v320 = vld [vmem:[%s266 + $0x3c] sm:$0xf]
      %v321 = vld [vmem:[%s266 + $0x40] sm:$0xf]
      %v322 = vld [vmem:[%s266 + $0x44] sm:$0xf]
      %v323 = vld [vmem:[%s266 + $0x48] sm:$0xf]
      %v324 = vld [vmem:[%s266 + $0x4c] sm:$0xf]
      %v325 = vld [vmem:[%s266 + $0x50] sm:$0xf]
      %v326 = vld [vmem:[%s266 + $0x54] sm:$0xf]
      %v327 = vld [vmem:[%s266 + $0x58] sm:$0xf]
      %v328 = vld [vmem:[%s266 + $0x5c] sm:$0xf]
      %v329 = vld [vmem:[%s266 + $0x60] sm:$0xf]
      %v330 = vld [vmem:[%s266 + $0x64] sm:$0xf]
      %v331 = vld [vmem:[%s266 + $0x68] sm:$0xf]
      %v332 = vld [vmem:[%s266 + $0x6c] sm:$0xf]
      %v333 = vld [vmem:[%s266 + $0x70] sm:$0xf]
      %v334 = vld [vmem:[%s266 + $0x74] sm:$0xf]
      %v335 = vld [vmem:[%s266 + $0x78] sm:$0xf]
      %v336 = vld [vmem:[%s266 + $0x7c] sm:$0xf]
      %v337 = vld [vmem:[%s2] sm:$0xf]
      %v338 = vld [vmem:[%s2 + $0x4] sm:$0xf]
      %v371 = vunpack.c.l.b16 %v305
      %v372 = vunpack.c.l.b16 %v306
      %v373 = vunpack.c.l.b16 %v307
      %v374 = vunpack.c.l.b16 %v308
      %v375 = vunpack.c.l.b16 %v309
      %v376 = vunpack.c.l.b16 %v310
      %v377 = vunpack.c.l.b16 %v311
      %v378 = vunpack.c.l.b16 %v312
      %v379 = vunpack.c.l.b16 %v313
      %v380 = vunpack.c.l.b16 %v314
      %v381 = vunpack.c.l.b16 %v315
      %v382 = vunpack.c.l.b16 %v316
      %v383 = vunpack.c.l.b16 %v317
      %v384 = vunpack.c.l.b16 %v318
      %v385 = vunpack.c.l.b16 %v319
      %v386 = vunpack.c.l.b16 %v320
      %v387 = vunpack.c.l.b16 %v321
      %v388 = vunpack.c.l.b16 %v322
      %v389 = vunpack.c.l.b16 %v323
      %v390 = vunpack.c.l.b16 %v324
      %v391 = vunpack.c.l.b16 %v325
      %v392 = vunpack.c.l.b16 %v326
      %v393 = vunpack.c.l.b16 %v327
      %v394 = vunpack.c.l.b16 %v328
      %v395 = vunpack.c.l.b16 %v329
      %v396 = vunpack.c.l.b16 %v330
      %v397 = vunpack.c.l.b16 %v331
      %v398 = vunpack.c.l.b16 %v332
      %v399 = vunpack.c.l.b16 %v333
      %v400 = vunpack.c.l.b16 %v334
      %v401 = vunpack.c.l.b16 %v335
      %v402 = vunpack.c.l.b16 %v336
      %v403 = vpack.c.b16 %v372, %v371
      %v404 = vpack.c.b16 %v374, %v373
      %v405 = vpack.c.b16 %v376, %v375
      %v406 = vpack.c.b16 %v378, %v377
      %v407 = vpack.c.b16 %v380, %v379
      %v408 = vpack.c.b16 %v382, %v381
      %v409 = vpack.c.b16 %v384, %v383
      %v410 = vpack.c.b16 %v386, %v385
      %v411 = vpack.c.b16 %v388, %v387
      %v412 = vpack.c.b16 %v390, %v389
      %v413 = vpack.c.b16 %v392, %v391
      %v414 = vpack.c.b16 %v394, %v393
      %v415 = vpack.c.b16 %v396, %v395
      %v416 = vpack.c.b16 %v398, %v397
      %v417 = vpack.c.b16 %v400, %v399
      %v418 = vpack.c.b16 %v402, %v401
      %v421 = vunpack.c.l.b16 %v337
      %v422 = vunpack.c.l.b16 %v338
      %v423 = vpack.c.b16 %v422, %v421
      %vm425 = vcmask 130048
      %v427 = vsel %vm425, %v403, 0
      %v430 = vsel %vm425, %v404, 0
      %v433 = vsel %vm425, %v405, 0
      %v436 = vsel %vm425, %v406, 0
      %v439 = vsel %vm425, %v407, 0
      %v442 = vsel %vm425, %v408, 0
      %v445 = vsel %vm425, %v409, 0
      %v448 = vsel %vm425, %v410, 0
      %v451 = vsel %vm425, %v411, 0
      %v454 = vsel %vm425, %v412, 0
      %v457 = vsel %vm425, %v413, 0
      %v460 = vsel %vm425, %v414, 0
      %v463 = vsel %vm425, %v415, 0
      %v466 = vsel %vm425, %v416, 0
      %v469 = vsel %vm425, %v417, 0
      %v472 = vsel %vm425, %v418, 0
      %474 = vmatprep.subr.bf16.mxu0 0
      %475 = vmatpush1.bf16.msra.mxu0 %v423
      %476 = vmatprep.subr.bf16.mxu0 0
      %477 = vmatpush1.bf16.msra.mxu0 0
      %478 = vmatprep.subr.bf16.mxu0 0
      %479 = vmatpush1.bf16.msra.mxu0 0
      %480 = vmatprep.subr.bf16.mxu0 0
      %481 = vmatpush1.bf16.msra.mxu0 0
      %482 = vmatprep.subr.bf16.mxu0 0
      %483 = vmatpush1.bf16.msra.mxu0 0
      %484 = vmatprep.subr.bf16.mxu0 0
      %485 = vmatpush1.bf16.msra.mxu0 0
      %486 = vmatprep.subr.bf16.mxu0 0
      %487 = vmatpush1.bf16.msra.mxu0 0
      %488 = vmatprep.subr.bf16.mxu0 0
      %489 = vmatpush1.bf16.msra.mxu0 0
      %490 = vmatprep.subr.bf16.mxu0 0
      %491 = vmatpush1.bf16.msra.mxu0 0
      %492 = vmatprep.subr.bf16.mxu0 0
      %493 = vmatpush1.bf16.msra.mxu0 0
      %494 = vmatprep.subr.bf16.mxu0 0
      %495 = vmatpush1.bf16.msra.mxu0 0
      %496 = vmatprep.subr.bf16.mxu0 0
      %497 = vmatpush1.bf16.msra.mxu0 0
      %498 = vmatprep.subr.bf16.mxu0 0
      %499 = vmatpush1.bf16.msra.mxu0 0
      %500 = vmatprep.subr.bf16.mxu0 0
      %501 = vmatpush1.bf16.msra.mxu0 0
      %502 = vmatprep.subr.bf16.mxu0 0
      %503 = vmatpush1.bf16.msra.mxu0 0
      %504 = vmatprep.subr.bf16.mxu0 0
      %505 = vmatpush1.bf16.msra.mxu0 0
      %506 = vmatprep.mubr.bf16.mxu0 0
      %507 = vmatmul.mubr.bf16.gmra.mrb[0].mxu0 %v427
      %v508 = vpop.f32.mrb[0].mxu0
      %v509 = vadd.f32 0.0, %v508
      %v510 = vpop.f32.mrb[0].mxu0
      %v511 = vpop.f32.mrb[0].mxu0
      %v512 = vadd.f32 0.0, %v511
      %v513 = vpop.f32.mrb[0].mxu0
      %514 = vmatprep.mubr.bf16.mxu0 0
      %515 = vmatmul.mubr.bf16.gmra.mrb[0].mxu0 %v430
      %v516 = vpop.f32.mrb[0].mxu0
      %v517 = vadd.f32 0.0, %v516
      %v518 = vpop.f32.mrb[0].mxu0
      %v519 = vpop.f32.mrb[0].mxu0
      %v520 = vadd.f32 0.0, %v519
      %v521 = vpop.f32.mrb[0].mxu0
      %522 = vmatprep.mubr.bf16.mxu0 0
      %523 = vmatmul.mubr.bf16.gmra.mrb[0].mxu0 %v433
      %v524 = vpop.f32.mrb[0].mxu0
      %v525 = vadd.f32 0.0, %v524
      %v526 = vpop.f32.mrb[0].mxu0
      %v527 = vpop.f32.mrb[0].mxu0
      %v528 = vadd.f32 0.0, %v527
      %v529 = vpop.f32.mrb[0].mxu0
      %530 = vmatprep.mubr.bf16.mxu0 0
      %531 = vmatmul.mubr.bf16.gmra.mrb[0].mxu0 %v436
      %v532 = vpop.f32.mrb[0].mxu0
      %v533 = vadd.f32 0.0, %v532
      %v534 = vpop.f32.mrb[0].mxu0
      %v535 = vpop.f32.mrb[0].mxu0
      %v536 = vadd.f32 0.0, %v535
      %v537 = vpop.f32.mrb[0].mxu0
      %538 = vmatprep.mubr.bf16.mxu0 0
      %539 = vmatmul.mubr.bf16.gmra.mrb[0].mxu0 %v439
      %v540 = vpop.f32.mrb[0].mxu0
      %v541 = vadd.f32 0.0, %v540
      %v542 = vpop.f32.mrb[0].mxu0
      %v543 = vpop.f32.mrb[0].mxu0
      %v544 = vadd.f32 0.0, %v543
      %v545 = vpop.f32.mrb[0].mxu0
      %546 = vmatprep.mubr.bf16.mxu0 0
      %547 = vmatmul.mubr.bf16.gmra.mrb[0].mxu0 %v442
      %v548 = vpop.f32.mrb[0].mxu0
      %v549 = vadd.f32 0.0, %v548
      %v550 = vpop.f32.mrb[0].mxu0
      %v551 = vpop.f32.mrb[0].mxu0
      %v552 = vadd.f32 0.0, %v551
      %v553 = vpop.f32.mrb[0].mxu0
      %554 = vmatprep.mubr.bf16.mxu0 0
      %555 = vmatmul.mubr.bf16.gmra.mrb[0].mxu0 %v445
      %v556 = vpop.f32.mrb[0].mxu0
      %v557 = vadd.f32 0.0, %v556
      %v558 = vpop.f32.mrb[0].mxu0
      %v559 = vpop.f32.mrb[0].mxu0
      %v560 = vadd.f32 0.0, %v559
      %v561 = vpop.f32.mrb[0].mxu0
      %562 = vmatprep.mubr.bf16.mxu0 0
      %563 = vmatmul.mubr.bf16.gmra.mrb[0].mxu0 %v448
      %v564 = vpop.f32.mrb[0].mxu0
      %v565 = vadd.f32 0.0, %v564
      %v566 = vpop.f32.mrb[0].mxu0
      %v567 = vpop.f32.mrb[0].mxu0
      %v568 = vadd.f32 0.0, %v567
      %v569 = vpop.f32.mrb[0].mxu0
      %570 = vmatprep.mubr.bf16.mxu0 0
      %571 = vmatmul.mubr.bf16.gmra.mrb[0].mxu0 %v451
      %v572 = vpop.f32.mrb[0].mxu0
      %v573 = vadd.f32 0.0, %v572
      %v574 = vpop.f32.mrb[0].mxu0
      %v575 = vpop.f32.mrb[0].mxu0
      %v576 = vadd.f32 0.0, %v575
      %v577 = vpop.f32.mrb[0].mxu0
      %578 = vmatprep.mubr.bf16.mxu0 0
      %579 = vmatmul.mubr.bf16.gmra.mrb[0].mxu0 %v454
      %v580 = vpop.f32.mrb[0].mxu0
      %v581 = vadd.f32 0.0, %v580
      %v582 = vpop.f32.mrb[0].mxu0
      %v583 = vpop.f32.mrb[0].mxu0
      %v584 = vadd.f32 0.0, %v583
      %v585 = vpop.f32.mrb[0].mxu0
      %586 = vmatprep.mubr.bf16.mxu0 0
      %587 = vmatmul.mubr.bf16.gmra.mrb[0].mxu0 %v457
      %v588 = vpop.f32.mrb[0].mxu0
      %v589 = vadd.f32 0.0, %v588
      %v590 = vpop.f32.mrb[0].mxu0
      %v591 = vpop.f32.mrb[0].mxu0
      %v592 = vadd.f32 0.0, %v591
      %v593 = vpop.f32.mrb[0].mxu0
      %594 = vmatprep.mubr.bf16.mxu0 0
      %595 = vmatmul.mubr.bf16.gmra.mrb[0].mxu0 %v460
      %v596 = vpop.f32.mrb[0].mxu0
      %v597 = vadd.f32 0.0, %v596
      %v598 = vpop.f32.mrb[0].mxu0
      %v599 = vpop.f32.mrb[0].mxu0
      %v600 = vadd.f32 0.0, %v599
      %v601 = vpop.f32.mrb[0].mxu0
      %602 = vmatprep.mubr.bf16.mxu0 0
      %603 = vmatmul.mubr.bf16.gmra.mrb[0].mxu0 %v463
      %v604 = vpop.f32.mrb[0].mxu0
      %v605 = vadd.f32 0.0, %v604
      %v606 = vpop.f32.mrb[0].mxu0
      %v607 = vpop.f32.mrb[0].mxu0
      %v608 = vadd.f32 0.0, %v607
      %v609 = vpop.f32.mrb[0].mxu0
      %610 = vmatprep.mubr.bf16.mxu0 0
      %611 = vmatmul.mubr.bf16.gmra.mrb[0].mxu0 %v466
      %v612 = vpop.f32.mrb[0].mxu0
      %v613 = vadd.f32 0.0, %v612
      %v614 = vpop.f32.mrb[0].mxu0
      %v615 = vpop.f32.mrb[0].mxu0
      %v616 = vadd.f32 0.0, %v615
      %v617 = vpop.f32.mrb[0].mxu0
      %618 = vmatprep.mubr.bf16.mxu0 0
      %619 = vmatmul.mubr.bf16.gmra.mrb[0].mxu0 %v469
      %v620 = vpop.f32.mrb[0].mxu0
      %v621 = vadd.f32 0.0, %v620
      %v622 = vpop.f32.mrb[0].mxu0
      %v623 = vpop.f32.mrb[0].mxu0
      %v624 = vadd.f32 0.0, %v623
      %v625 = vpop.f32.mrb[0].mxu0
      %626 = vmatprep.mubr.bf16.mxu0 0
      %627 = vmatmul.mubr.bf16.gmra.mrb[0].mxu0 %v472
      %v628 = vpop.f32.mrb[0].mxu0
      %v629 = vadd.f32 0.0, %v628
      %v630 = vpop.f32.mrb[0].mxu0
      %v631 = vpop.f32.mrb[0].mxu0
      %v632 = vadd.f32 0.0, %v631
      %v633 = vpop.f32.mrb[0].mxu0
      %634 = vdwg.mxu0
      %v635 = vpack.c.bf16 %v512, %v509
      %v636 = vpack.c.bf16 %v520, %v517
      %v637 = vpack.c.bf16 %v528, %v525
      %v638 = vpack.c.bf16 %v536, %v533
      %v639 = vpack.c.bf16 %v544, %v541
      %v640 = vpack.c.bf16 %v552, %v549
      %v641 = vpack.c.bf16 %v560, %v557
      %v642 = vpack.c.bf16 %v568, %v565
      %v643 = vpack.c.bf16 %v576, %v573
      %v644 = vpack.c.bf16 %v584, %v581
      %v645 = vpack.c.bf16 %v592, %v589
      %v646 = vpack.c.bf16 %v600, %v597
      %v647 = vpack.c.bf16 %v608, %v605
      %v648 = vpack.c.bf16 %v616, %v613
      %v649 = vpack.c.bf16 %v624, %v621
      %v650 = vpack.c.bf16 %v632, %v629
      %v651 = vld [vmem:[%s3] sm:$0x1]
      %v653 = vlaneseq
      %v654 = vshrl.u32 %v653, 7
      %v655 = vsub.s32 0, %v654
      %v656 = vrot.slane %v651, %v655
      %v690 = vunpack.c.l.b16 %v273
      %v691 = vunpack.c.h.b16 %v273
      %v692 = vunpack.c.l.b16 %v274
      %v693 = vunpack.c.h.b16 %v274
      %v694 = vunpack.c.l.b16 %v275
      %v695 = vunpack.c.h.b16 %v275
      %v696 = vunpack.c.l.b16 %v276
      %v697 = vunpack.c.h.b16 %v276
      %v698 = vunpack.c.l.b16 %v277
      %v699 = vunpack.c.h.b16 %v277
      %v700 = vunpack.c.l.b16 %v278
      %v701 = vunpack.c.h.b16 %v278
      %v702 = vunpack.c.l.b16 %v279
      %v703 = vunpack.c.h.b16 %v279
      %v704 = vunpack.c.l.b16 %v280
      %v705 = vunpack.c.h.b16 %v280
      %v706 = vunpack.c.l.b16 %v281
      %v707 = vunpack.c.h.b16 %v281
      %v708 = vunpack.c.l.b16 %v282
      %v709 = vunpack.c.h.b16 %v282
      %v710 = vunpack.c.l.b16 %v283
      %v711 = vunpack.c.h.b16 %v283
      %v712 = vunpack.c.l.b16 %v284
      %v713 = vunpack.c.h.b16 %v284
      %v714 = vunpack.c.l.b16 %v285
      %v715 = vunpack.c.h.b16 %v285
      %v716 = vunpack.c.l.b16 %v286
      %v717 = vunpack.c.h.b16 %v286
      %v718 = vunpack.c.l.b16 %v287
      %v719 = vunpack.c.h.b16 %v287
      %v720 = vunpack.c.l.b16 %v288
      %v721 = vunpack.c.h.b16 %v288
      %v722 = vunpack.c.l.b16 %v289
      %v723 = vunpack.c.h.b16 %v289
      %v724 = vunpack.c.l.b16 %v290
      %v725 = vunpack.c.h.b16 %v290
      %v726 = vunpack.c.l.b16 %v291
      %v727 = vunpack.c.h.b16 %v291
      %v728 = vunpack.c.l.b16 %v292
      %v729 = vunpack.c.h.b16 %v292
      %v730 = vunpack.c.l.b16 %v293
      %v731 = vunpack.c.h.b16 %v293
      %v732 = vunpack.c.l.b16 %v294
      %v733 = vunpack.c.h.b16 %v294
      %v734 = vunpack.c.l.b16 %v295
      %v735 = vunpack.c.h.b16 %v295
      %v736 = vunpack.c.l.b16 %v296
      %v737 = vunpack.c.h.b16 %v296
      %v738 = vunpack.c.l.b16 %v297
      %v739 = vunpack.c.h.b16 %v297
      %v740 = vunpack.c.l.b16 %v298
      %v741 = vunpack.c.h.b16 %v298
      %v742 = vunpack.c.l.b16 %v299
      %v743 = vunpack.c.h.b16 %v299
      %v744 = vunpack.c.l.b16 %v300
      %v745 = vunpack.c.h.b16 %v300
      %v746 = vunpack.c.l.b16 %v301
      %v747 = vunpack.c.h.b16 %v301
      %v748 = vunpack.c.l.b16 %v302
      %v749 = vunpack.c.h.b16 %v302
      %v750 = vunpack.c.l.b16 %v303
      %v751 = vunpack.c.h.b16 %v303
      %v752 = vunpack.c.l.b16 %v304
      %v753 = vunpack.c.h.b16 %v304
      %v754 = vpack.c.b16 %v692, %v690
      %v755 = vpack.c.b16 %v693, %v691
      %v756 = vpack.c.b16 %v696, %v694
      %v757 = vpack.c.b16 %v697, %v695
      %v758 = vpack.c.b16 %v700, %v698
      %v759 = vpack.c.b16 %v701, %v699
      %v760 = vpack.c.b16 %v704, %v702
      %v761 = vpack.c.b16 %v705, %v703
      %v762 = vpack.c.b16 %v708, %v706
      %v763 = vpack.c.b16 %v709, %v707
      %v764 = vpack.c.b16 %v712, %v710
      %v765 = vpack.c.b16 %v713, %v711
      %v766 = vpack.c.b16 %v716, %v714
      %v767 = vpack.c.b16 %v717, %v715
      %v768 = vpack.c.b16 %v720, %v718
      %v769 = vpack.c.b16 %v721, %v719
      %v770 = vpack.c.b16 %v724, %v722
      %v771 = vpack.c.b16 %v725, %v723
      %v772 = vpack.c.b16 %v728, %v726
      %v773 = vpack.c.b16 %v729, %v727
      %v774 = vpack.c.b16 %v732, %v730
      %v775 = vpack.c.b16 %v733, %v731
      %v776 = vpack.c.b16 %v736, %v734
      %v777 = vpack.c.b16 %v737, %v735
      %v778 = vpack.c.b16 %v740, %v738
      %v779 = vpack.c.b16 %v741, %v739
      %v780 = vpack.c.b16 %v744, %v742
      %v781 = vpack.c.b16 %v745, %v743
      %v782 = vpack.c.b16 %v748, %v746
      %v783 = vpack.c.b16 %v749, %v747
      %v784 = vpack.c.b16 %v752, %v750
      %v785 = vpack.c.b16 %v753, %v751
      %818 = vmatprep.subr.bf16.mxu0 0
      %819 = vmatpush1.bf16.msra.mxu0 %v635
      %820 = vmatprep.subr.bf16.mxu0 0
      %821 = vmatpush1.bf16.msra.mxu0 %v636
      %822 = vmatprep.subr.bf16.mxu0 0
      %823 = vmatpush1.bf16.msra.mxu0 %v637
      %824 = vmatprep.subr.bf16.mxu0 0
      %825 = vmatpush1.bf16.msra.mxu0 %v638
      %826 = vmatprep.subr.bf16.mxu0 0
      %827 = vmatpush1.bf16.msra.mxu0 %v639
      %828 = vmatprep.subr.bf16.mxu0 0
      %829 = vmatpush1.bf16.msra.mxu0 %v640
      %830 = vmatprep.subr.bf16.mxu0 0
      %831 = vmatpush1.bf16.msra.mxu0 %v641
      %832 = vmatprep.subr.bf16.mxu0 0
      %833 = vmatpush1.bf16.msra.mxu0 %v642
      %834 = vmatprep.subr.bf16.mxu0 0
      %835 = vmatpush1.bf16.msra.mxu0 %v643
      %836 = vmatprep.subr.bf16.mxu0 0
      %837 = vmatpush1.bf16.msra.mxu0 %v644
      %838 = vmatprep.subr.bf16.mxu0 0
      %839 = vmatpush1.bf16.msra.mxu0 %v645
      %840 = vmatprep.subr.bf16.mxu0 0
      %841 = vmatpush1.bf16.msra.mxu0 %v646
      %842 = vmatprep.subr.bf16.mxu0 0
      %843 = vmatpush1.bf16.msra.mxu0 %v647
      %844 = vmatprep.subr.bf16.mxu0 0
      %845 = vmatpush1.bf16.msra.mxu0 %v648
      %846 = vmatprep.subr.bf16.mxu0 0
      %847 = vmatpush1.bf16.msra.mxu0 %v649
      %848 = vmatprep.subr.bf16.mxu0 0
      %849 = vmatpush1.bf16.msra.mxu0 %v650
      %850 = vmatprep.mubr.bf16.mxu0 %v755
      %851 = vmatmul.mubr.bf16.gmra.mrb[0].mxu0 %v754
      %v852 = vpop.f32.mrb[0].mxu0
      %v853 = vadd.f32 %v656, %v852
      %v854 = vpop.f32.mrb[0].mxu0
      %v855 = vpop.f32.mrb[0].mxu0
      %v856 = vadd.f32 %v656, %v855
      %v857 = vpop.f32.mrb[0].mxu0
      %858 = vmatprep.mubr.bf16.mxu0 %v757
      %859 = vmatmul.mubr.bf16.gmra.mrb[0].mxu0 %v756
      %v860 = vpop.f32.mrb[0].mxu0
      %v861 = vadd.f32 %v656, %v860
      %v862 = vpop.f32.mrb[0].mxu0
      %v863 = vpop.f32.mrb[0].mxu0
      %v864 = vadd.f32 %v656, %v863
      %v865 = vpop.f32.mrb[0].mxu0
      %866 = vmatprep.mubr.bf16.mxu0 %v759
      %867 = vmatmul.mubr.bf16.gmra.mrb[0].mxu0 %v758
      %v868 = vpop.f32.mrb[0].mxu0
      %v869 = vadd.f32 %v656, %v868
      %v870 = vpop.f32.mrb[0].mxu0
      %v871 = vpop.f32.mrb[0].mxu0
      %v872 = vadd.f32 %v656, %v871
      %v873 = vpop.f32.mrb[0].mxu0
      %874 = vmatprep.mubr.bf16.mxu0 %v761
      %875 = vmatmul.mubr.bf16.gmra.mrb[0].mxu0 %v760
      %v876 = vpop.f32.mrb[0].mxu0
      %v877 = vadd.f32 %v656, %v876
      %v878 = vpop.f32.mrb[0].mxu0
      %v879 = vpop.f32.mrb[0].mxu0
      %v880 = vadd.f32 %v656, %v879
      %v881 = vpop.f32.mrb[0].mxu0
      %882 = vmatprep.mubr.bf16.mxu0 %v763
      %883 = vmatmul.mubr.bf16.gmra.mrb[0].mxu0 %v762
      %v884 = vpop.f32.mrb[0].mxu0
      %v885 = vadd.f32 %v656, %v884
      %v886 = vpop.f32.mrb[0].mxu0
      %v887 = vpop.f32.mrb[0].mxu0
      %v888 = vadd.f32 %v656, %v887
      %v889 = vpop.f32.mrb[0].mxu0
      %890 = vmatprep.mubr.bf16.mxu0 %v765
      %891 = vmatmul.mubr.bf16.gmra.mrb[0].mxu0 %v764
      %v892 = vpop.f32.mrb[0].mxu0
      %v893 = vadd.f32 %v656, %v892
      %v894 = vpop.f32.mrb[0].mxu0
      %v895 = vpop.f32.mrb[0].mxu0
      %v896 = vadd.f32 %v656, %v895
      %v897 = vpop.f32.mrb[0].mxu0
      %898 = vmatprep.mubr.bf16.mxu0 %v767
      %899 = vmatmul.mubr.bf16.gmra.mrb[0].mxu0 %v766
      %v900 = vpop.f32.mrb[0].mxu0
      %v901 = vadd.f32 %v656, %v900
      %v902 = vpop.f32.mrb[0].mxu0
      %v903 = vpop.f32.mrb[0].mxu0
      %v904 = vadd.f32 %v656, %v903
      %v905 = vpop.f32.mrb[0].mxu0
      %906 = vmatprep.mubr.bf16.mxu0 %v769
      %907 = vmatmul.mubr.bf16.gmra.mrb[0].mxu0 %v768
      %v908 = vpop.f32.mrb[0].mxu0
      %v909 = vadd.f32 %v656, %v908
      %v910 = vpop.f32.mrb[0].mxu0
      %v911 = vpop.f32.mrb[0].mxu0
      %v912 = vadd.f32 %v656, %v911
      %v913 = vpop.f32.mrb[0].mxu0
      %914 = vmatprep.mubr.bf16.mxu0 %v771
      %915 = vmatmul.mubr.bf16.gmra.mrb[0].mxu0 %v770
      %v916 = vpop.f32.mrb[0].mxu0
      %v917 = vadd.f32 %v656, %v916
      %v918 = vpop.f32.mrb[0].mxu0
      %v919 = vpop.f32.mrb[0].mxu0
      %v920 = vadd.f32 %v656, %v919
      %v921 = vpop.f32.mrb[0].mxu0
      %922 = vmatprep.mubr.bf16.mxu0 %v773
      %923 = vmatmul.mubr.bf16.gmra.mrb[0].mxu0 %v772
      %v924 = vpop.f32.mrb[0].mxu0
      %v925 = vadd.f32 %v656, %v924
      %v926 = vpop.f32.mrb[0].mxu0
      %v927 = vpop.f32.mrb[0].mxu0
      %v928 = vadd.f32 %v656, %v927
      %v929 = vpop.f32.mrb[0].mxu0
      %930 = vmatprep.mubr.bf16.mxu0 %v775
      %931 = vmatmul.mubr.bf16.gmra.mrb[0].mxu0 %v774
      %v932 = vpop.f32.mrb[0].mxu0
      %v933 = vadd.f32 %v656, %v932
      %v934 = vpop.f32.mrb[0].mxu0
      %v935 = vpop.f32.mrb[0].mxu0
      %v936 = vadd.f32 %v656, %v935
      %v937 = vpop.f32.mrb[0].mxu0
      %938 = vmatprep.mubr.bf16.mxu0 %v777
      %939 = vmatmul.mubr.bf16.gmra.mrb[0].mxu0 %v776
      %v940 = vpop.f32.mrb[0].mxu0
      %v941 = vadd.f32 %v656, %v940
      %v942 = vpop.f32.mrb[0].mxu0
      %v943 = vpop.f32.mrb[0].mxu0
      %v944 = vadd.f32 %v656, %v943
      %v945 = vpop.f32.mrb[0].mxu0
      %946 = vmatprep.mubr.bf16.mxu0 %v779
      %947 = vmatmul.mubr.bf16.gmra.mrb[0].mxu0 %v778
      %v948 = vpop.f32.mrb[0].mxu0
      %v949 = vadd.f32 %v656, %v948
      %v950 = vpop.f32.mrb[0].mxu0
      %v951 = vpop.f32.mrb[0].mxu0
      %v952 = vadd.f32 %v656, %v951
      %v953 = vpop.f32.mrb[0].mxu0
      %954 = vmatprep.mubr.bf16.mxu0 %v781
      %955 = vmatmul.mubr.bf16.gmra.mrb[0].mxu0 %v780
      %v956 = vpop.f32.mrb[0].mxu0
      %v957 = vadd.f32 %v656, %v956
      %v958 = vpop.f32.mrb[0].mxu0
      %v959 = vpop.f32.mrb[0].mxu0
      %v960 = vadd.f32 %v656, %v959
      %v961 = vpop.f32.mrb[0].mxu0
      %962 = vmatprep.mubr.bf16.mxu0 %v783
      %963 = vmatmul.mubr.bf16.gmra.mrb[0].mxu0 %v782
      %v964 = vpop.f32.mrb[0].mxu0
      %v965 = vadd.f32 %v656, %v964
      %v966 = vpop.f32.mrb[0].mxu0
      %v967 = vpop.f32.mrb[0].mxu0
      %v968 = vadd.f32 %v656, %v967
      %v969 = vpop.f32.mrb[0].mxu0
      %970 = vmatprep.mubr.bf16.mxu0 %v785
      %971 = vmatmul.mubr.bf16.gmra.mrb[0].mxu0 %v784
      %v972 = vpop.f32.mrb[0].mxu0
      %v973 = vadd.f32 %v656, %v972
      %v974 = vpop.f32.mrb[0].mxu0
      %v975 = vpop.f32.mrb[0].mxu0
      %v976 = vadd.f32 %v656, %v975
      %v977 = vpop.f32.mrb[0].mxu0
      %978 = vdwg.mxu0
      %v979 = vmax.f32 %v853, 0.0
      %v980 = vmax.f32 %v856, 0.0
      %v981 = vmax.f32 %v861, 0.0
      %v982 = vmax.f32 %v864, 0.0
      %v983 = vmax.f32 %v869, 0.0
      %v984 = vmax.f32 %v872, 0.0
      %v985 = vmax.f32 %v877, 0.0
      %v986 = vmax.f32 %v880, 0.0
      %v987 = vmax.f32 %v885, 0.0
      %v988 = vmax.f32 %v888, 0.0
      %v989 = vmax.f32 %v893, 0.0
      %v990 = vmax.f32 %v896, 0.0
      %v991 = vmax.f32 %v901, 0.0
      %v992 = vmax.f32 %v904, 0.0
      %v993 = vmax.f32 %v909, 0.0
      %v994 = vmax.f32 %v912, 0.0
      %v995 = vmax.f32 %v917, 0.0
      %v996 = vmax.f32 %v920, 0.0
      %v997 = vmax.f32 %v925, 0.0
      %v998 = vmax.f32 %v928, 0.0
      %v999 = vmax.f32 %v933, 0.0
      %v1000 = vmax.f32 %v936, 0.0
      %v1001 = vmax.f32 %v941, 0.0
      %v1002 = vmax.f32 %v944, 0.0
      %v1003 = vmax.f32 %v949, 0.0
      %v1004 = vmax.f32 %v952, 0.0
      %v1005 = vmax.f32 %v957, 0.0
      %v1006 = vmax.f32 %v960, 0.0
      %v1007 = vmax.f32 %v965, 0.0
      %v1008 = vmax.f32 %v968, 0.0
      %v1009 = vmax.f32 %v973, 0.0
      %v1010 = vmax.f32 %v976, 0.0
      %v1011 = vpack.c.bf16 %v980, %v979
      %v1012 = vpack.c.bf16 %v982, %v981
      %v1013 = vpack.c.bf16 %v984, %v983
      %v1014 = vpack.c.bf16 %v986, %v985
      %v1015 = vpack.c.bf16 %v988, %v987
      %v1016 = vpack.c.bf16 %v990, %v989
      %v1017 = vpack.c.bf16 %v992, %v991
      %v1018 = vpack.c.bf16 %v994, %v993
      %v1019 = vpack.c.bf16 %v996, %v995
      %v1020 = vpack.c.bf16 %v998, %v997
      %v1021 = vpack.c.bf16 %v1000, %v999
      %v1022 = vpack.c.bf16 %v1002, %v1001
      %v1023 = vpack.c.bf16 %v1004, %v1003
      %v1024 = vpack.c.bf16 %v1006, %v1005
      %v1025 = vpack.c.bf16 %v1008, %v1007
      %v1026 = vpack.c.bf16 %v1010, %v1009
      %v1027 = vld [vmem:[%s4] sm:$0xf]
      %v1028 = vld [vmem:[%s4 + $0x4] sm:$0xf]
      %v1029 = vld [vmem:[%s4 + $0x8] sm:$0xf]
      %v1030 = vld [vmem:[%s4 + $0xc] sm:$0xf]
      %v1035 = vunpack.c.l.b16 %v1027
      %v1036 = vunpack.c.l.b16 %v1028
      %v1037 = vunpack.c.l.b16 %v1029
      %v1038 = vunpack.c.l.b16 %v1030
      %v1039 = vpack.c.b16 %v1036, %v1035
      %v1040 = vpack.c.b16 %v1038, %v1037
      %vm1043 = vcmask 261120
      %v1045 = vsel %vm1043, %v1011, 0
      %v1048 = vsel %vm1043, %v1012, 0
      %v1051 = vsel %vm1043, %v1013, 0
      %v1054 = vsel %vm1043, %v1014, 0
      %v1057 = vsel %vm1043, %v1015, 0
      %v1060 = vsel %vm1043, %v1016, 0
      %v1063 = vsel %vm1043, %v1017, 0
      %v1066 = vsel %vm1043, %v1018, 0
      %v1069 = vsel %vm1043, %v1019, 0
      %v1072 = vsel %vm1043, %v1020, 0
      %v1075 = vsel %vm1043, %v1021, 0
      %v1078 = vsel %vm1043, %v1022, 0
      %v1081 = vsel %vm1043, %v1023, 0
      %v1084 = vsel %vm1043, %v1024, 0
      %v1087 = vsel %vm1043, %v1025, 0
      %v1090 = vsel %vm1043, %v1026, 0
      %1092 = vmatprep.subr.bf16.mxu0 0
      %1093 = vmatpush1.bf16.msra.mxu0 %v1039
      %1094 = vmatprep.subr.bf16.mxu0 0
      %1095 = vmatpush1.bf16.msra.mxu0 %v1040
      %1096 = vmatprep.subr.bf16.mxu0 0
      %1097 = vmatpush1.bf16.msra.mxu0 0
      %1098 = vmatprep.subr.bf16.mxu0 0
      %1099 = vmatpush1.bf16.msra.mxu0 0
      %1100 = vmatprep.subr.bf16.mxu0 0
      %1101 = vmatpush1.bf16.msra.mxu0 0
      %1102 = vmatprep.subr.bf16.mxu0 0
      %1103 = vmatpush1.bf16.msra.mxu0 0
      %1104 = vmatprep.subr.bf16.mxu0 0
      %1105 = vmatpush1.bf16.msra.mxu0 0
      %1106 = vmatprep.subr.bf16.mxu0 0
      %1107 = vmatpush1.bf16.msra.mxu0 0
      %1108 = vmatprep.subr.bf16.mxu0 0
      %1109 = vmatpush1.bf16.msra.mxu0 0
      %1110 = vmatprep.subr.bf16.mxu0 0
      %1111 = vmatpush1.bf16.msra.mxu0 0
      %1112 = vmatprep.subr.bf16.mxu0 0
      %1113 = vmatpush1.bf16.msra.mxu0 0
      %1114 = vmatprep.subr.bf16.mxu0 0
      %1115 = vmatpush1.bf16.msra.mxu0 0
      %1116 = vmatprep.subr.bf16.mxu0 0
      %1117 = vmatpush1.bf16.msra.mxu0 0
      %1118 = vmatprep.subr.bf16.mxu0 0
      %1119 = vmatpush1.bf16.msra.mxu0 0
      %1120 = vmatprep.subr.bf16.mxu0 0
      %1121 = vmatpush1.bf16.msra.mxu0 0
      %1122 = vmatprep.subr.bf16.mxu0 0
      %1123 = vmatpush1.bf16.msra.mxu0 0
      %1124 = vmatprep.mubr.bf16.mxu0 0
      %1125 = vmatmul.mubr.bf16.gmra.mrb[0].mxu0 %v1045
      %v1126 = vpop.f32.mrb[0].mxu0
      %v1127 = vadd.f32 0.0, %v1126
      %v1128 = vpop.f32.mrb[0].mxu0
      %v1129 = vpop.f32.mrb[0].mxu0
      %v1130 = vadd.f32 0.0, %v1129
      %v1131 = vpop.f32.mrb[0].mxu0
      %1132 = vmatprep.mubr.bf16.mxu0 0
      %1133 = vmatmul.mubr.bf16.gmra.mrb[0].mxu0 %v1048
      %v1134 = vpop.f32.mrb[0].mxu0
      %v1135 = vadd.f32 0.0, %v1134
      %v1136 = vpop.f32.mrb[0].mxu0
      %v1137 = vpop.f32.mrb[0].mxu0
      %v1138 = vadd.f32 0.0, %v1137
      %v1139 = vpop.f32.mrb[0].mxu0
      %1140 = vmatprep.mubr.bf16.mxu0 0
      %1141 = vmatmul.mubr.bf16.gmra.mrb[0].mxu0 %v1051
      %v1142 = vpop.f32.mrb[0].mxu0
      %v1143 = vadd.f32 0.0, %v1142
      %v1144 = vpop.f32.mrb[0].mxu0
      %v1145 = vpop.f32.mrb[0].mxu0
      %v1146 = vadd.f32 0.0, %v1145
      %v1147 = vpop.f32.mrb[0].mxu0
      %1148 = vmatprep.mubr.bf16.mxu0 0
      %1149 = vmatmul.mubr.bf16.gmra.mrb[0].mxu0 %v1054
      %v1150 = vpop.f32.mrb[0].mxu0
      %v1151 = vadd.f32 0.0, %v1150
      %v1152 = vpop.f32.mrb[0].mxu0
      %v1153 = vpop.f32.mrb[0].mxu0
      %v1154 = vadd.f32 0.0, %v1153
      %v1155 = vpop.f32.mrb[0].mxu0
      %1156 = vmatprep.mubr.bf16.mxu0 0
      %1157 = vmatmul.mubr.bf16.gmra.mrb[0].mxu0 %v1057
      %v1158 = vpop.f32.mrb[0].mxu0
      %v1159 = vadd.f32 0.0, %v1158
      %v1160 = vpop.f32.mrb[0].mxu0
      %v1161 = vpop.f32.mrb[0].mxu0
      %v1162 = vadd.f32 0.0, %v1161
      %v1163 = vpop.f32.mrb[0].mxu0
      %1164 = vmatprep.mubr.bf16.mxu0 0
      %1165 = vmatmul.mubr.bf16.gmra.mrb[0].mxu0 %v1060
      %v1166 = vpop.f32.mrb[0].mxu0
      %v1167 = vadd.f32 0.0, %v1166
      %v1168 = vpop.f32.mrb[0].mxu0
      %v1169 = vpop.f32.mrb[0].mxu0
      %v1170 = vadd.f32 0.0, %v1169
      %v1171 = vpop.f32.mrb[0].mxu0
      %1172 = vmatprep.mubr.bf16.mxu0 0
      %1173 = vmatmul.mubr.bf16.gmra.mrb[0].mxu0 %v1063
      %v1174 = vpop.f32.mrb[0].mxu0
      %v1175 = vadd.f32 0.0, %v1174
      %v1176 = vpop.f32.mrb[0].mxu0
      %v1177 = vpop.f32.mrb[0].mxu0
      %v1178 = vadd.f32 0.0, %v1177
      %v1179 = vpop.f32.mrb[0].mxu0
      %1180 = vmatprep.mubr.bf16.mxu0 0
      %1181 = vmatmul.mubr.bf16.gmra.mrb[0].mxu0 %v1066
      %v1182 = vpop.f32.mrb[0].mxu0
      %v1183 = vadd.f32 0.0, %v1182
      %v1184 = vpop.f32.mrb[0].mxu0
      %v1185 = vpop.f32.mrb[0].mxu0
      %v1186 = vadd.f32 0.0, %v1185
      %v1187 = vpop.f32.mrb[0].mxu0
      %1188 = vmatprep.mubr.bf16.mxu0 0
      %1189 = vmatmul.mubr.bf16.gmra.mrb[0].mxu0 %v1069
      %v1190 = vpop.f32.mrb[0].mxu0
      %v1191 = vadd.f32 0.0, %v1190
      %v1192 = vpop.f32.mrb[0].mxu0
      %v1193 = vpop.f32.mrb[0].mxu0
      %v1194 = vadd.f32 0.0, %v1193
      %v1195 = vpop.f32.mrb[0].mxu0
      %1196 = vmatprep.mubr.bf16.mxu0 0
      %1197 = vmatmul.mubr.bf16.gmra.mrb[0].mxu0 %v1072
      %v1198 = vpop.f32.mrb[0].mxu0
      %v1199 = vadd.f32 0.0, %v1198
      %v1200 = vpop.f32.mrb[0].mxu0
      %v1201 = vpop.f32.mrb[0].mxu0
      %v1202 = vadd.f32 0.0, %v1201
      %v1203 = vpop.f32.mrb[0].mxu0
      %1204 = vmatprep.mubr.bf16.mxu0 0
      %1205 = vmatmul.mubr.bf16.gmra.mrb[0].mxu0 %v1075
      %v1206 = vpop.f32.mrb[0].mxu0
      %v1207 = vadd.f32 0.0, %v1206
      %v1208 = vpop.f32.mrb[0].mxu0
      %v1209 = vpop.f32.mrb[0].mxu0
      %v1210 = vadd.f32 0.0, %v1209
      %v1211 = vpop.f32.mrb[0].mxu0
      %1212 = vmatprep.mubr.bf16.mxu0 0
      %1213 = vmatmul.mubr.bf16.gmra.mrb[0].mxu0 %v1078
      %v1214 = vpop.f32.mrb[0].mxu0
      %v1215 = vadd.f32 0.0, %v1214
      %v1216 = vpop.f32.mrb[0].mxu0
      %v1217 = vpop.f32.mrb[0].mxu0
      %v1218 = vadd.f32 0.0, %v1217
      %v1219 = vpop.f32.mrb[0].mxu0
      %1220 = vmatprep.mubr.bf16.mxu0 0
      %1221 = vmatmul.mubr.bf16.gmra.mrb[0].mxu0 %v1081
      %v1222 = vpop.f32.mrb[0].mxu0
      %v1223 = vadd.f32 0.0, %v1222
      %v1224 = vpop.f32.mrb[0].mxu0
      %v1225 = vpop.f32.mrb[0].mxu0
      %v1226 = vadd.f32 0.0, %v1225
      %v1227 = vpop.f32.mrb[0].mxu0
      %1228 = vmatprep.mubr.bf16.mxu0 0
      %1229 = vmatmul.mubr.bf16.gmra.mrb[0].mxu0 %v1084
      %v1230 = vpop.f32.mrb[0].mxu0
      %v1231 = vadd.f32 0.0, %v1230
      %v1232 = vpop.f32.mrb[0].mxu0
      %v1233 = vpop.f32.mrb[0].mxu0
      %v1234 = vadd.f32 0.0, %v1233
      %v1235 = vpop.f32.mrb[0].mxu0
      %1236 = vmatprep.mubr.bf16.mxu0 0
      %1237 = vmatmul.mubr.bf16.gmra.mrb[0].mxu0 %v1087
      %v1238 = vpop.f32.mrb[0].mxu0
      %v1239 = vadd.f32 0.0, %v1238
      %v1240 = vpop.f32.mrb[0].mxu0
      %v1241 = vpop.f32.mrb[0].mxu0
      %v1242 = vadd.f32 0.0, %v1241
      %v1243 = vpop.f32.mrb[0].mxu0
      %1244 = vmatprep.mubr.bf16.mxu0 0
      %1245 = vmatmul.mubr.bf16.gmra.mrb[0].mxu0 %v1090
      %v1246 = vpop.f32.mrb[0].mxu0
      %v1247 = vadd.f32 0.0, %v1246
      %v1248 = vpop.f32.mrb[0].mxu0
      %v1249 = vpop.f32.mrb[0].mxu0
      %v1250 = vadd.f32 0.0, %v1249
      %v1251 = vpop.f32.mrb[0].mxu0
      %1252 = vdwg.mxu0
      %v1253 = vpack.c.bf16 %v1130, %v1127
      %v1254 = vpack.c.bf16 %v1138, %v1135
      %v1255 = vpack.c.bf16 %v1146, %v1143
      %v1256 = vpack.c.bf16 %v1154, %v1151
      %v1257 = vpack.c.bf16 %v1162, %v1159
      %v1258 = vpack.c.bf16 %v1170, %v1167
      %v1259 = vpack.c.bf16 %v1178, %v1175
      %v1260 = vpack.c.bf16 %v1186, %v1183
      %v1261 = vpack.c.bf16 %v1194, %v1191
      %v1262 = vpack.c.bf16 %v1202, %v1199
      %v1263 = vpack.c.bf16 %v1210, %v1207
      %v1264 = vpack.c.bf16 %v1218, %v1215
      %v1265 = vpack.c.bf16 %v1226, %v1223
      %v1266 = vpack.c.bf16 %v1234, %v1231
      %v1267 = vpack.c.bf16 %v1242, %v1239
      %v1268 = vpack.c.bf16 %v1250, %v1247
      %v1269 = vld [vmem:[%s5] sm:$0x1]
      %v1271 = vlaneseq
      %v1272 = vshrl.u32 %v1271, 7
      %v1273 = vsub.s32 0, %v1272
      %v1274 = vrot.slane %v1269, %v1273
      %1276 = vmatprep.subr.bf16.mxu0 0
      %1277 = vmatpush1.bf16.msra.mxu0 %v1253
      %1278 = vmatprep.subr.bf16.mxu0 0
      %1279 = vmatpush1.bf16.msra.mxu0 %v1254
      %1280 = vmatprep.subr.bf16.mxu0 0
      %1281 = vmatpush1.bf16.msra.mxu0 %v1255
      %1282 = vmatprep.subr.bf16.mxu0 0
      %1283 = vmatpush1.bf16.msra.mxu0 %v1256
      %1284 = vmatprep.subr.bf16.mxu0 0
      %1285 = vmatpush1.bf16.msra.mxu0 %v1257
      %1286 = vmatprep.subr.bf16.mxu0 0
      %1287 = vmatpush1.bf16.msra.mxu0 %v1258
      %1288 = vmatprep.subr.bf16.mxu0 0
      %1289 = vmatpush1.bf16.msra.mxu0 %v1259
      %1290 = vmatprep.subr.bf16.mxu0 0
      %1291 = vmatpush1.bf16.msra.mxu0 %v1260
      %1292 = vmatprep.subr.bf16.mxu0 0
      %1293 = vmatpush1.bf16.msra.mxu0 %v1261
      %1294 = vmatprep.subr.bf16.mxu0 0
      %1295 = vmatpush1.bf16.msra.mxu0 %v1262
      %1296 = vmatprep.subr.bf16.mxu0 0
      %1297 = vmatpush1.bf16.msra.mxu0 %v1263
      %1298 = vmatprep.subr.bf16.mxu0 0
      %1299 = vmatpush1.bf16.msra.mxu0 %v1264
      %1300 = vmatprep.subr.bf16.mxu0 0
      %1301 = vmatpush1.bf16.msra.mxu0 %v1265
      %1302 = vmatprep.subr.bf16.mxu0 0
      %1303 = vmatpush1.bf16.msra.mxu0 %v1266
      %1304 = vmatprep.subr.bf16.mxu0 0
      %1305 = vmatpush1.bf16.msra.mxu0 %v1267
      %1306 = vmatprep.subr.bf16.mxu0 0
      %1307 = vmatpush1.bf16.msra.mxu0 %v1268
      %1308 = vmatprep.mubr.bf16.mxu0 %v755
      %1309 = vmatmul.mubr.bf16.gmra.mrb[0].mxu0 %v754
      %v1310 = vpop.f32.mrb[0].mxu0
      %v1311 = vadd.f32 %v1274, %v1310
      %v1312 = vpop.f32.mrb[0].mxu0
      %v1313 = vpop.f32.mrb[0].mxu0
      %v1314 = vadd.f32 %v1274, %v1313
      %v1315 = vpop.f32.mrb[0].mxu0
      %1316 = vmatprep.mubr.bf16.mxu0 %v757
      %1317 = vmatmul.mubr.bf16.gmra.mrb[0].mxu0 %v756
      %v1318 = vpop.f32.mrb[0].mxu0
      %v1319 = vadd.f32 %v1274, %v1318
      %v1320 = vpop.f32.mrb[0].mxu0
      %v1321 = vpop.f32.mrb[0].mxu0
      %v1322 = vadd.f32 %v1274, %v1321
      %v1323 = vpop.f32.mrb[0].mxu0
      %1324 = vmatprep.mubr.bf16.mxu0 %v759
      %1325 = vmatmul.mubr.bf16.gmra.mrb[0].mxu0 %v758
      %v1326 = vpop.f32.mrb[0].mxu0
      %v1327 = vadd.f32 %v1274, %v1326
      %v1328 = vpop.f32.mrb[0].mxu0
      %v1329 = vpop.f32.mrb[0].mxu0
      %v1330 = vadd.f32 %v1274, %v1329
      %v1331 = vpop.f32.mrb[0].mxu0
      %1332 = vmatprep.mubr.bf16.mxu0 %v761
      %1333 = vmatmul.mubr.bf16.gmra.mrb[0].mxu0 %v760
      %v1334 = vpop.f32.mrb[0].mxu0
      %v1335 = vadd.f32 %v1274, %v1334
      %v1336 = vpop.f32.mrb[0].mxu0
      %v1337 = vpop.f32.mrb[0].mxu0
      %v1338 = vadd.f32 %v1274, %v1337
      %v1339 = vpop.f32.mrb[0].mxu0
      %1340 = vmatprep.mubr.bf16.mxu0 %v763
      %1341 = vmatmul.mubr.bf16.gmra.mrb[0].mxu0 %v762
      %v1342 = vpop.f32.mrb[0].mxu0
      %v1343 = vadd.f32 %v1274, %v1342
      %v1344 = vpop.f32.mrb[0].mxu0
      %v1345 = vpop.f32.mrb[0].mxu0
      %v1346 = vadd.f32 %v1274, %v1345
      %v1347 = vpop.f32.mrb[0].mxu0
      %1348 = vmatprep.mubr.bf16.mxu0 %v765
      %1349 = vmatmul.mubr.bf16.gmra.mrb[0].mxu0 %v764
      %v1350 = vpop.f32.mrb[0].mxu0
      %v1351 = vadd.f32 %v1274, %v1350
      %v1352 = vpop.f32.mrb[0].mxu0
      %v1353 = vpop.f32.mrb[0].mxu0
      %v1354 = vadd.f32 %v1274, %v1353
      %v1355 = vpop.f32.mrb[0].mxu0
      %1356 = vmatprep.mubr.bf16.mxu0 %v767
      %1357 = vmatmul.mubr.bf16.gmra.mrb[0].mxu0 %v766
      %v1358 = vpop.f32.mrb[0].mxu0
      %v1359 = vadd.f32 %v1274, %v1358
      %v1360 = vpop.f32.mrb[0].mxu0
      %v1361 = vpop.f32.mrb[0].mxu0
      %v1362 = vadd.f32 %v1274, %v1361
      %v1363 = vpop.f32.mrb[0].mxu0
      %1364 = vmatprep.mubr.bf16.mxu0 %v769
      %1365 = vmatmul.mubr.bf16.gmra.mrb[0].mxu0 %v768
      %v1366 = vpop.f32.mrb[0].mxu0
      %v1367 = vadd.f32 %v1274, %v1366
      %v1368 = vpop.f32.mrb[0].mxu0
      %v1369 = vpop.f32.mrb[0].mxu0
      %v1370 = vadd.f32 %v1274, %v1369
      %v1371 = vpop.f32.mrb[0].mxu0
      %1372 = vmatprep.mubr.bf16.mxu0 %v771
      %1373 = vmatmul.mubr.bf16.gmra.mrb[0].mxu0 %v770
      %v1374 = vpop.f32.mrb[0].mxu0
      %v1375 = vadd.f32 %v1274, %v1374
      %v1376 = vpop.f32.mrb[0].mxu0
      %v1377 = vpop.f32.mrb[0].mxu0
      %v1378 = vadd.f32 %v1274, %v1377
      %v1379 = vpop.f32.mrb[0].mxu0
      %1380 = vmatprep.mubr.bf16.mxu0 %v773
      %1381 = vmatmul.mubr.bf16.gmra.mrb[0].mxu0 %v772
      %v1382 = vpop.f32.mrb[0].mxu0
      %v1383 = vadd.f32 %v1274, %v1382
      %v1384 = vpop.f32.mrb[0].mxu0
      %v1385 = vpop.f32.mrb[0].mxu0
      %v1386 = vadd.f32 %v1274, %v1385
      %v1387 = vpop.f32.mrb[0].mxu0
      %1388 = vmatprep.mubr.bf16.mxu0 %v775
      %1389 = vmatmul.mubr.bf16.gmra.mrb[0].mxu0 %v774
      %v1390 = vpop.f32.mrb[0].mxu0
      %v1391 = vadd.f32 %v1274, %v1390
      %v1392 = vpop.f32.mrb[0].mxu0
      %v1393 = vpop.f32.mrb[0].mxu0
      %v1394 = vadd.f32 %v1274, %v1393
      %v1395 = vpop.f32.mrb[0].mxu0
      %1396 = vmatprep.mubr.bf16.mxu0 %v777
      %1397 = vmatmul.mubr.bf16.gmra.mrb[0].mxu0 %v776
      %v1398 = vpop.f32.mrb[0].mxu0
      %v1399 = vadd.f32 %v1274, %v1398
      %v1400 = vpop.f32.mrb[0].mxu0
      %v1401 = vpop.f32.mrb[0].mxu0
      %v1402 = vadd.f32 %v1274, %v1401
      %v1403 = vpop.f32.mrb[0].mxu0
      %1404 = vmatprep.mubr.bf16.mxu0 %v779
      %1405 = vmatmul.mubr.bf16.gmra.mrb[0].mxu0 %v778
      %v1406 = vpop.f32.mrb[0].mxu0
      %v1407 = vadd.f32 %v1274, %v1406
      %v1408 = vpop.f32.mrb[0].mxu0
      %v1409 = vpop.f32.mrb[0].mxu0
      %v1410 = vadd.f32 %v1274, %v1409
      %v1411 = vpop.f32.mrb[0].mxu0
      %1412 = vmatprep.mubr.bf16.mxu0 %v781
      %1413 = vmatmul.mubr.bf16.gmra.mrb[0].mxu0 %v780
      %v1414 = vpop.f32.mrb[0].mxu0
      %v1415 = vadd.f32 %v1274, %v1414
      %v1416 = vpop.f32.mrb[0].mxu0
      %v1417 = vpop.f32.mrb[0].mxu0
      %v1418 = vadd.f32 %v1274, %v1417
      %v1419 = vpop.f32.mrb[0].mxu0
      %1420 = vmatprep.mubr.bf16.mxu0 %v783
      %1421 = vmatmul.mubr.bf16.gmra.mrb[0].mxu0 %v782
      %v1422 = vpop.f32.mrb[0].mxu0
      %v1423 = vadd.f32 %v1274, %v1422
      %v1424 = vpop.f32.mrb[0].mxu0
      %v1425 = vpop.f32.mrb[0].mxu0
      %v1426 = vadd.f32 %v1274, %v1425
      %v1427 = vpop.f32.mrb[0].mxu0
      %1428 = vmatprep.mubr.bf16.mxu0 %v785
      %1429 = vmatmul.mubr.bf16.gmra.mrb[0].mxu0 %v784
      %v1430 = vpop.f32.mrb[0].mxu0
      %v1431 = vadd.f32 %v1274, %v1430
      %v1432 = vpop.f32.mrb[0].mxu0
      %v1433 = vpop.f32.mrb[0].mxu0
      %v1434 = vadd.f32 %v1274, %v1433
      %v1435 = vpop.f32.mrb[0].mxu0
      %1436 = vdwg.mxu0
      %v1437 = vmax.f32 %v1311, 0.0
      %v1438 = vmax.f32 %v1314, 0.0
      %v1439 = vmax.f32 %v1319, 0.0
      %v1440 = vmax.f32 %v1322, 0.0
      %v1441 = vmax.f32 %v1327, 0.0
      %v1442 = vmax.f32 %v1330, 0.0
      %v1443 = vmax.f32 %v1335, 0.0
      %v1444 = vmax.f32 %v1338, 0.0
      %v1445 = vmax.f32 %v1343, 0.0
      %v1446 = vmax.f32 %v1346, 0.0
      %v1447 = vmax.f32 %v1351, 0.0
      %v1448 = vmax.f32 %v1354, 0.0
      %v1449 = vmax.f32 %v1359, 0.0
      %v1450 = vmax.f32 %v1362, 0.0
      %v1451 = vmax.f32 %v1367, 0.0
      %v1452 = vmax.f32 %v1370, 0.0
      %v1453 = vmax.f32 %v1375, 0.0
      %v1454 = vmax.f32 %v1378, 0.0
      %v1455 = vmax.f32 %v1383, 0.0
      %v1456 = vmax.f32 %v1386, 0.0
      %v1457 = vmax.f32 %v1391, 0.0
      %v1458 = vmax.f32 %v1394, 0.0
      %v1459 = vmax.f32 %v1399, 0.0
      %v1460 = vmax.f32 %v1402, 0.0
      %v1461 = vmax.f32 %v1407, 0.0
      %v1462 = vmax.f32 %v1410, 0.0
      %v1463 = vmax.f32 %v1415, 0.0
      %v1464 = vmax.f32 %v1418, 0.0
      %v1465 = vmax.f32 %v1423, 0.0
      %v1466 = vmax.f32 %v1426, 0.0
      %v1467 = vmax.f32 %v1431, 0.0
      %v1468 = vmax.f32 %v1434, 0.0
      %1469 = vst.msk [vmem:[%s271] sm:$0xff] %vm1043, %v1437
      %1470 = vst.msk [vmem:[%s271 + $0x8] sm:$0xff] %vm1043, %v1438
      %1471 = vst.msk [vmem:[%s271 + $0x10] sm:$0xff] %vm1043, %v1439
      %1472 = vst.msk [vmem:[%s271 + $0x18] sm:$0xff] %vm1043, %v1440
      %1473 = vst.msk [vmem:[%s271 + $0x20] sm:$0xff] %vm1043, %v1441
      %1474 = vst.msk [vmem:[%s271 + $0x28] sm:$0xff] %vm1043, %v1442
      %1475 = vst.msk [vmem:[%s271 + $0x30] sm:$0xff] %vm1043, %v1443
      %1476 = vst.msk [vmem:[%s271 + $0x38] sm:$0xff] %vm1043, %v1444
      %1477 = vst.msk [vmem:[%s271 + $0x40] sm:$0xff] %vm1043, %v1445
      %1478 = vst.msk [vmem:[%s271 + $0x48] sm:$0xff] %vm1043, %v1446
      %1479 = vst.msk [vmem:[%s271 + $0x50] sm:$0xff] %vm1043, %v1447
      %1480 = vst.msk [vmem:[%s271 + $0x58] sm:$0xff] %vm1043, %v1448
      %1481 = vst.msk [vmem:[%s271 + $0x60] sm:$0xff] %vm1043, %v1449
      %1482 = vst.msk [vmem:[%s271 + $0x68] sm:$0xff] %vm1043, %v1450
      %1483 = vst.msk [vmem:[%s271 + $0x70] sm:$0xff] %vm1043, %v1451
      %1484 = vst.msk [vmem:[%s271 + $0x78] sm:$0xff] %vm1043, %v1452
      %1485 = vst.msk [vmem:[%s271 + $0x80] sm:$0xff] %vm1043, %v1453
      %1486 = vst.msk [vmem:[%s271 + $0x88] sm:$0xff] %vm1043, %v1454
      %1487 = vst.msk [vmem:[%s271 + $0x90] sm:$0xff] %vm1043, %v1455
      %1488 = vst.msk [vmem:[%s271 + $0x98] sm:$0xff] %vm1043, %v1456
      %1489 = vst.msk [vmem:[%s271 + $0xa0] sm:$0xff] %vm1043, %v1457
      %1490 = vst.msk [vmem:[%s271 + $0xa8] sm:$0xff] %vm1043, %v1458
      %1491 = vst.msk [vmem:[%s271 + $0xb0] sm:$0xff] %vm1043, %v1459
      %1492 = vst.msk [vmem:[%s271 + $0xb8] sm:$0xff] %vm1043, %v1460
      %1493 = vst.msk [vmem:[%s271 + $0xc0] sm:$0xff] %vm1043, %v1461
      %1494 = vst.msk [vmem:[%s271 + $0xc8] sm:$0xff] %vm1043, %v1462
      %1495 = vst.msk [vmem:[%s271 + $0xd0] sm:$0xff] %vm1043, %v1463
      %1496 = vst.msk [vmem:[%s271 + $0xd8] sm:$0xff] %vm1043, %v1464
      %1497 = vst.msk [vmem:[%s271 + $0xe0] sm:$0xff] %vm1043, %v1465
      %1498 = vst.msk [vmem:[%s271 + $0xe8] sm:$0xff] %vm1043, %v1466
      %1499 = vst.msk [vmem:[%s271 + $0xf0] sm:$0xff] %vm1043, %v1467
      %1500 = vst.msk [vmem:[%s271 + $0xf8] sm:$0xff] %vm1043, %v1468
      %p1501 = scmp.lt.s32.totalorder %s17, 2
      %s1502 = scalar_select %p1501, %s17, 2
      %s1503 = smul.addr %s1502, 32
      %s1504 = smul.addr %s1503, 8
      %s1505 = scalar_lea.vmem %s6, %s1504
      // Predicated region
      $region45: #{encoder_forward.1} parent=43 // pred_check
        %p1506 = pneg %p171
      $region46: #{encoder_forward.1} parent=43 // pred_check_branch
        %1508 = sbr.rel (%p1506) target = $region48
      $region47: #{encoder_forward.1} parent=43 // pred_region
        _
      $region48: #{encoder_forward.1} parent=43 // pred_fallthru
        _
    $region44: #{encoder_forward.1} parent=5 // pred_fallthru
      _
    %p1509 = scmp.le.s32.totalorder 2, %s12
    // Predicated region
    $region49: #{encoder_forward.1} parent=5 // pred_check
      %p1510 = pneg %p1509
    $region50: #{encoder_forward.1} parent=5 // pred_check_branch
      %1512 = sbr.rel (%p1510) target = $region52
    $region51: #{encoder_forward.1} parent=5 // pred_region
      %s1513 = ssub.s32 %s12, 2
      // Predicated region
      $region53: #{encoder_forward.1} parent=51 // pred_check
        %p1514 = pneg %p177
      $region54: #{encoder_forward.1} parent=51 // pred_check_branch
        %1516 = sbr.rel (%p1514) target = $region56
      $region55: #{encoder_forward.1} parent=51 // pred_region
        %p1517 = scmp.lt.s32.totalorder %s18, 2
        %s1518 = scalar_select %p1517, %s18, 2
        %s1519 = smul.addr %s1518, 32
        %s1520 = smul.addr %s1519, 8
        %s1521 = scalar_lea.vmem %s6, %s1520
      $region56: #{encoder_forward.1} parent=51 // pred_fallthru
        _
    $region52: #{encoder_forward.1} parent=5 // pred_fallthru
      _
  $region6: #{encoder_forward.1} parent=0 // loop_footer
    %s16 = sadd.s32 1, %s12
  $region7: #{encoder_forward.1} parent=0 // loop_footer_branch
    %11 = sbr.rel target = $region3
  $region8: #{encoder_forward.1} parent=0 // loop_exit
    _

</llo_original>
